<compile_context>
chip_gen: v7x
topology: tpu7x:2x2x1
jax: 0.10.0
libtpu: 0.0.40
codegen_flags: <defaults>
</compile_context>

<pallas_src>
from functools import partial

import jax
import jax.numpy as jnp
from jax.experimental import pallas as pl
from jax.experimental.pallas import tpu as pltpu


# ------------------------------ Pallas kernel -------------------------------

def _fused_resnet_block_kernel(W, M, x_ref, cmask_ref, w1_ref, b1_ref,
                               w2_ref, b2_ref, o_ref, xp_ref, hp_ref):
    """One batch image per grid step, fully fused:
         h = relu(conv3x3(x) + b1) ; out = leaky_relu(x + conv3x3(h) + b2, 0.01)
    Layout: (C, H*W) with pixels on the lane axis."""
    HW = x_ref.shape[-1]
    cdt = xp_ref.dtype

    x = x_ref[0]                                     # (Cin, HW), compute dtype

    def stage(dst_ref, val):
        # Put `val` in the centre of a zero-margined scratch buffer so every
        # 3x3 tap becomes a static in-bounds slice; the zero margins provide
        # the SAME padding in the row direction for free.
        c = dst_ref.shape[0]
        dst_ref[:, :M] = jnp.zeros((c, M), cdt)
        dst_ref[:, M + HW:] = jnp.zeros((c, M), cdt)
        dst_ref[:, M:M + HW] = val.astype(cdt)

    def conv3x3(src_ref, w_ref):
        # src_ref: (C, M + HW + M) zero-margined; w_ref: (9, Cout, C).
        # 9 shifted MXU pushes accumulated in f32 (no im2col, no HBM traffic).
        acc = None
        t = 0
        for dh in (-1, 0, 1):
            for dw in (-1, 0, 1):
                s = dh * W + dw
                opnd = src_ref[:, M + s: M + s + HW]          # shifted view
                if dw != 0:
                    opnd = opnd * cmask_ref[dw + 1]           # kill row wrap-around
                d = jnp.dot(w_ref[t], opnd, preferred_element_type=jnp.float32)
                acc = d if acc is None else acc + d
                t += 1
        return acc                                            # (Cout, HW) f32

    # ---- conv1 + bias + ReLU; `h` stays in VMEM ----------------------------
    stage(xp_ref, x)
    h = jnp.maximum(conv3x3(xp_ref, w1_ref) + b1_ref[...], 0.0)

    # ---- conv2 + bias + identity skip (reuse x in VMEM) + leaky_relu -------
    stage(hp_ref, h)
    y = x.astype(jnp.float32) + conv3x3(hp_ref, w2_ref) + b2_ref[...]
    o_ref[0] = jnp.where(y >= 0.0, y, 0.01 * y)               # slope = 0.01


# -------------------------------- wrapper -----------------------------------

@partial(jax.jit, static_argnames=("compute_dtype",))
def resnet_block_forward(x_nchw, w1_hwio, b1, w2_hwio, b2,
                         compute_dtype=jnp.float32):
    """ResNetBlock forward: x (N,Cin,H,W) f32 -> (N,Cout,H,W) f32."""
    N, Cin, H, W = x_nchw.shape
    Cout = w1_hwio.shape[-1]
    assert w1_hwio.shape == (3, 3, Cin, Cout) and w2_hwio.shape == (3, 3, Cout, Cout)
    if Cin != Cout:
        raise ValueError("identity skip path requires ch_in == ch_out")
    HW = H * W

    # --- layout plumbing: reshapes only, no transposes / im2col -------------
    x_flat = x_nchw.reshape(N, Cin, HW).astype(compute_dtype)       # NCHW -> (N,C,HW)
    # HWIO (3,3,Ci,Co) -> per-tap (9, Co, Ci): kernel computes W_t @ X_shift_t,
    # putting H*W on the MXU output / lane axis (lane-dense stores, free NCHW out).
    w1_t = jnp.transpose(w1_hwio.reshape(9, Cin, Cout), (0, 2, 1)).astype(compute_dtype)
    w2_t = jnp.transpose(w2_hwio.reshape(9, Cout, Cout), (0, 2, 1)).astype(compute_dtype)
    b1_c = b1.reshape(Cout, 1).astype(jnp.float32)
    b2_c = b2.reshape(Cout, 1).astype(jnp.float32)

    # Column-validity masks for the dw = -1 / +1 taps (flat shifts wrap rows).
    ww = jnp.arange(W)
    col_masks = jnp.stack([
        jnp.tile(ww >= 1, H),            # dw = -1 : source column w-1 must exist
        jnp.ones((HW,), jnp.bool_),      # dw =  0 : unused
        jnp.tile(ww <= W - 2, H),        # dw = +1 : source column w+1 must exist
    ]).astype(compute_dtype).reshape(3, 1, HW)

    # Zero margin (>= W+1, rounded to 128 lanes) so every tap slice is in-bounds.
    M = ((W + 1 + 127) // 128) * 128
    L = HW + 2 * M

    # Explicit VMEM budget (v7x has only 64 MiB physical; default scoped ~32 MiB).
    isz = jnp.dtype(compute_dtype).itemsize
    est = (2 * Cin * HW * isz                 # x blocks (double-buffered)
           + 2 * Cout * HW * 4                # output blocks (double-buffered)
           + 2 * 3 * HW * isz                 # column masks
           + 2 * 9 * Cout * (Cin + Cout) * isz + 4 * Cout * 4   # weights, biases
           + (Cin + Cout) * L * isz           # padded scratch buffers
           + 6 * Cout * HW * 4)               # f32 accumulators / temporaries
    vmem_limit = int(min(64 * 2 ** 20, max(32 * 2 ** 20, 4 * est)))

    out_flat = pl.pallas_call(
        partial(_fused_resnet_block_kernel, W, M),
        out_shape=jax.ShapeDtypeStruct((N, Cout, HW), jnp.float32),
        grid=(N,),
        in_specs=[
            pl.BlockSpec((1, Cin, HW), lambda n: (n, 0, 0)),     # x (also the skip)
            pl.BlockSpec((3, 1, HW), lambda n: (0, 0, 0)),       # column masks
            pl.BlockSpec((9, Cout, Cin), lambda n: (0, 0, 0)),   # conv1 weights
            pl.BlockSpec((Cout, 1), lambda n: (0, 0)),           # conv1 bias
            pl.BlockSpec((9, Cout, Cout), lambda n: (0, 0, 0)),  # conv2 weights
            pl.BlockSpec((Cout, 1), lambda n: (0, 0)),           # conv2 bias
        ],
        out_specs=pl.BlockSpec((1, Cout, HW), lambda n: (n, 0, 0)),
        scratch_shapes=[pltpu.VMEM((Cin, L), compute_dtype),     # padded x
                        pltpu.VMEM((Cout, L), compute_dtype)],   # padded h
        compiler_params=pltpu.CompilerParams(
            dimension_semantics=("parallel",),
            vmem_limit_bytes=vmem_limit),
    )(x_flat, col_masks, w1_t, b1_c, w2_t, b2_c)

    return out_flat.reshape(N, Cout, H, W)           # already NCHW: free reshape


# ---------------------------- pure-JAX reference ----------------------------

def _reference(x_nchw, w1_hwio, b1, w2_hwio, b2):
    x = jnp.transpose(x_nchw, (0, 2, 3, 1))
    dn = jax.lax.conv_dimension_numbers(x.shape, w1_hwio.shape,
                                        ("NHWC", "HWIO", "NHWC"))
    h = jax.lax.conv_general_dilated(x, w1_hwio, (1, 1), "SAME",
                                     dimension_numbers=dn) + b1
    h = jnp.maximum(h, 0.0)
    r = jax.lax.conv_general_dilated(h, w2_hwio, (1, 1), "SAME",
                                     dimension_numbers=dn) + b2
    y = x + r
    y = jnp.where(y >= 0.0, y, 0.01 * y)
    return jnp.transpose(y, (0, 3, 1, 2))


# ----------------------------------- main ------------------------------------

if __name__ == "__main__":
    N, Cin, H, W = 2, 4, 16, 16
    Cout = Cin  # extra_subnetwork = identity => ch_out == ch_in

    key = jax.random.PRNGKey(0)
    k1, k2, k3, k4, kx = jax.random.split(key, 5)
    w1 = 0.1 * jax.random.normal(k1, (3, 3, Cin, Cout), jnp.float32)
    b1 = 0.1 * jax.random.normal(k2, (Cout,), jnp.float32)
    w2 = 0.1 * jax.random.normal(k3, (3, 3, Cout, Cout), jnp.float32)
    b2 = 0.1 * jax.random.normal(k4, (Cout,), jnp.float32)
    x = jax.random.normal(kx, (N, Cin, H, W), jnp.float32)   # NCHW like PyTorch

    ref = _reference(x, w1, b1, w2, b2)

    # f32 compute path: exact-ish
    out = jax.block_until_ready(resnet_block_forward(x, w1, b1, w2, b2))
    assert out.shape == (N, Cout, H, W), out.shape
    assert jnp.allclose(out, ref, atol=1e-4, rtol=1e-4), (
        float(jnp.max(jnp.abs(out - ref))))

    # bf16 MXU-operand path (f32 accumulation): looser tolerance
    out_bf16 = jax.block_until_ready(
        resnet_block_forward(x, w1, b1, w2, b2, compute_dtype=jnp.bfloat16))
    assert jnp.allclose(out_bf16, ref, atol=5e-2, rtol=5e-2), (
        float(jnp.max(jnp.abs(out_bf16 - ref))))

    print("KERNEL_OK")
</pallas_src>

<mosaic_0001>
module attributes {stable_mosaic.version = 11 : i64} {
  func.func @_fused_resnet_block_kernel(%arg0: i32, %arg1: memref<1x4x256xf32, #tpu.memory_space<vmem>>, %arg2: memref<3x1x256xf32, #tpu.memory_space<vmem>>, %arg3: memref<9x4x4xf32, #tpu.memory_space<vmem>>, %arg4: memref<4x1xf32, #tpu.memory_space<vmem>>, %arg5: memref<9x4x4xf32, #tpu.memory_space<vmem>>, %arg6: memref<4x1xf32, #tpu.memory_space<vmem>>, %arg7: memref<1x4x256xf32, #tpu.memory_space<vmem>>, %arg8: memref<4x512xf32, #tpu.memory_space<vmem>>, %arg9: memref<4x512xf32, #tpu.memory_space<vmem>>) attributes {dimension_semantics = [#tpu.dimension_semantics<parallel>], iteration_bounds = array<i64: 2>, scalar_prefetch = 0 : i64, scratch_operands = 2 : i64, tpu.core_type = #tpu.core_type<tc>, window_params = [{transform_indices = @transform_0, window_bounds = array<i64: 1, 4, 256>}, {pipeline_mode = #tpu.pipeline_mode<synchronous>, transform_indices = @transform_1, window_bounds = array<i64: 3, 1, 256>}, {pipeline_mode = #tpu.pipeline_mode<synchronous>, transform_indices = @transform_2, window_bounds = array<i64: 9, 4, 4>}, {pipeline_mode = #tpu.pipeline_mode<synchronous>, transform_indices = @transform_3, window_bounds = array<i64: 4, 1>}, {pipeline_mode = #tpu.pipeline_mode<synchronous>, transform_indices = @transform_4, window_bounds = array<i64: 9, 4, 4>}, {pipeline_mode = #tpu.pipeline_mode<synchronous>, transform_indices = @transform_5, window_bounds = array<i64: 4, 1>}, {transform_indices = @transform_6, window_bounds = array<i64: 1, 4, 256>}]} {
    %c0 = arith.constant 0 : index
    %c0_0 = arith.constant 0 : index
    %c0_1 = arith.constant 0 : index
    %0 = vector.load %arg1[%c0, %c0_0, %c0_1] : memref<1x4x256xf32, #tpu.memory_space<vmem>>, vector<1x4x256xf32>
    %1 = vector.shape_cast %0 : vector<1x4x256xf32> to vector<4x256xf32>
    %cst = arith.constant 0.000000e+00 : f32
    %2 = vector.broadcast %cst : f32 to vector<4x128xf32>
    %c0_2 = arith.constant 0 : index
    %c0_3 = arith.constant 0 : index
    %3 = vector.load %arg8[%c0_2, %c0_3] : memref<4x512xf32, #tpu.memory_space<vmem>>, vector<4x128xf32>
    tpu.vector_store %arg8[%c0_2, %c0_3], %2 {strides = array<i32>} : memref<4x512xf32, #tpu.memory_space<vmem>>, vector<4x128xf32>,
    %cst_4 = arith.constant 0.000000e+00 : f32
    %4 = vector.broadcast %cst_4 : f32 to vector<4x128xf32>
    %c0_5 = arith.constant 0 : index
    %c384 = arith.constant 384 : index
    %5 = vector.load %arg8[%c0_5, %c384] : memref<4x512xf32, #tpu.memory_space<vmem>>, vector<4x128xf32>
    tpu.vector_store %arg8[%c0_5, %c384], %4 {strides = array<i32>} : memref<4x512xf32, #tpu.memory_space<vmem>>, vector<4x128xf32>,
    %c0_6 = arith.constant 0 : index
    %c128 = arith.constant 128 : index
    %6 = vector.load %arg8[%c0_6, %c128] : memref<4x512xf32, #tpu.memory_space<vmem>>, vector<4x256xf32>
    tpu.vector_store %arg8[%c0_6, %c128], %1 {strides = array<i32>} : memref<4x512xf32, #tpu.memory_space<vmem>>, vector<4x256xf32>,
    %c0_7 = arith.constant 0 : index
    %c111 = arith.constant 111 : index
    %7 = vector.load %arg8[%c0_7, %c111] : memref<4x512xf32, #tpu.memory_space<vmem>>, vector<4x256xf32>
    %c0_8 = arith.constant 0 : index
    %c0_9 = arith.constant 0 : index
    %c0_10 = arith.constant 0 : index
    %8 = vector.load %arg2[%c0_8, %c0_9, %c0_10] : memref<3x1x256xf32, #tpu.memory_space<vmem>>, vector<1x1x256xf32>
    %9 = vector.shape_cast %8 : vector<1x1x256xf32> to vector<1x256xf32>
    %10 = vector.broadcast %9 : vector<1x256xf32> to vector<4x256xf32>
    %11 = arith.mulf %7, %10 : vector<4x256xf32>
    %c0_11 = arith.constant 0 : index
    %c0_12 = arith.constant 0 : index
    %c0_13 = arith.constant 0 : index
    %12 = vector.load %arg3[%c0_11, %c0_12, %c0_13] : memref<9x4x4xf32, #tpu.memory_space<vmem>>, vector<1x4x4xf32>
    %13 = vector.shape_cast %12 : vector<1x4x4xf32> to vector<4x4xf32>
    %cst_14 = arith.constant dense<0.000000e+00> : vector<4x256xf32>
    %14 = tpu.matmul %13, %11, %cst_14 {dimension_numbers = #tpu.dot_dimension_numbers<[1], [0], [0], [1], [0, 0, 1, 1], [], []>} : vector<4x4xf32>, vector<4x256xf32>, vector<4x256xf32> -> vector<4x256xf32>
    %c0_15 = arith.constant 0 : index
    %c112 = arith.constant 112 : index
    %15 = vector.load %arg8[%c0_15, %c112] : memref<4x512xf32, #tpu.memory_space<vmem>>, vector<4x256xf32>
    %c1 = arith.constant 1 : index
    %c0_16 = arith.constant 0 : index
    %c0_17 = arith.constant 0 : index
    %16 = vector.load %arg3[%c1, %c0_16, %c0_17] : memref<9x4x4xf32, #tpu.memory_space<vmem>>, vector<1x4x4xf32>
    %17 = vector.shape_cast %16 : vector<1x4x4xf32> to vector<4x4xf32>
    %cst_18 = arith.constant dense<0.000000e+00> : vector<4x256xf32>
    %18 = tpu.matmul %17, %15, %cst_18 {dimension_numbers = #tpu.dot_dimension_numbers<[1], [0], [0], [1], [0, 0, 1, 1], [], []>} : vector<4x4xf32>, vector<4x256xf32>, vector<4x256xf32> -> vector<4x256xf32>
    %19 = arith.addf %14, %18 : vector<4x256xf32>
    %c0_19 = arith.constant 0 : index
    %c113 = arith.constant 113 : index
    %20 = vector.load %arg8[%c0_19, %c113] : memref<4x512xf32, #tpu.memory_space<vmem>>, vector<4x256xf32>
    %c2 = arith.constant 2 : index
    %c0_20 = arith.constant 0 : index
    %c0_21 = arith.constant 0 : index
    %21 = vector.load %arg2[%c2, %c0_20, %c0_21] : memref<3x1x256xf32, #tpu.memory_space<vmem>>, vector<1x1x256xf32>
    %22 = vector.shape_cast %21 : vector<1x1x256xf32> to vector<1x256xf32>
    %23 = vector.broadcast %22 : vector<1x256xf32> to vector<4x256xf32>
    %24 = arith.mulf %20, %23 : vector<4x256xf32>
    %c2_22 = arith.constant 2 : index
    %c0_23 = arith.constant 0 : index
    %c0_24 = arith.constant 0 : index
    %25 = vector.load %arg3[%c2_22, %c0_23, %c0_24] : memref<9x4x4xf32, #tpu.memory_space<vmem>>, vector<1x4x4xf32>
    %26 = vector.shape_cast %25 : vector<1x4x4xf32> to vector<4x4xf32>
    %cst_25 = arith.constant dense<0.000000e+00> : vector<4x256xf32>
    %27 = tpu.matmul %26, %24, %cst_25 {dimension_numbers = #tpu.dot_dimension_numbers<[1], [0], [0], [1], [0, 0, 1, 1], [], []>} : vector<4x4xf32>, vector<4x256xf32>, vector<4x256xf32> -> vector<4x256xf32>
    %28 = arith.addf %19, %27 : vector<4x256xf32>
    %c0_26 = arith.constant 0 : index
    %c127 = arith.constant 127 : index
    %29 = vector.load %arg8[%c0_26, %c127] : memref<4x512xf32, #tpu.memory_space<vmem>>, vector<4x256xf32>
    %c0_27 = arith.constant 0 : index
    %c0_28 = arith.constant 0 : index
    %c0_29 = arith.constant 0 : index
    %30 = vector.load %arg2[%c0_27, %c0_28, %c0_29] : memref<3x1x256xf32, #tpu.memory_space<vmem>>, vector<1x1x256xf32>
    %31 = vector.shape_cast %30 : vector<1x1x256xf32> to vector<1x256xf32>
    %32 = vector.broadcast %31 : vector<1x256xf32> to vector<4x256xf32>
    %33 = arith.mulf %29, %32 : vector<4x256xf32>
    %c3 = arith.constant 3 : index
    %c0_30 = arith.constant 0 : index
    %c0_31 = arith.constant 0 : index
    %34 = vector.load %arg3[%c3, %c0_30, %c0_31] : memref<9x4x4xf32, #tpu.memory_space<vmem>>, vector<1x4x4xf32>
    %35 = vector.shape_cast %34 : vector<1x4x4xf32> to vector<4x4xf32>
    %cst_32 = arith.constant dense<0.000000e+00> : vector<4x256xf32>
    %36 = tpu.matmul %35, %33, %cst_32 {dimension_numbers = #tpu.dot_dimension_numbers<[1], [0], [0], [1], [0, 0, 1, 1], [], []>} : vector<4x4xf32>, vector<4x256xf32>, vector<4x256xf32> -> vector<4x256xf32>
    %37 = arith.addf %28, %36 : vector<4x256xf32>
    %c0_33 = arith.constant 0 : index
    %c128_34 = arith.constant 128 : index
    %38 = vector.load %arg8[%c0_33, %c128_34] : memref<4x512xf32, #tpu.memory_space<vmem>>, vector<4x256xf32>
    %c4 = arith.constant 4 : index
    %c0_35 = arith.constant 0 : index
    %c0_36 = arith.constant 0 : index
    %39 = vector.load %arg3[%c4, %c0_35, %c0_36] : memref<9x4x4xf32, #tpu.memory_space<vmem>>, vector<1x4x4xf32>
    %40 = vector.shape_cast %39 : vector<1x4x4xf32> to vector<4x4xf32>
    %cst_37 = arith.constant dense<0.000000e+00> : vector<4x256xf32>
    %41 = tpu.matmul %40, %38, %cst_37 {dimension_numbers = #tpu.dot_dimension_numbers<[1], [0], [0], [1], [0, 0, 1, 1], [], []>} : vector<4x4xf32>, vector<4x256xf32>, vector<4x256xf32> -> vector<4x256xf32>
    %42 = arith.addf %37, %41 : vector<4x256xf32>
    %c0_38 = arith.constant 0 : index
    %c129 = arith.constant 129 : index
    %43 = vector.load %arg8[%c0_38, %c129] : memref<4x512xf32, #tpu.memory_space<vmem>>, vector<4x256xf32>
    %c2_39 = arith.constant 2 : index
    %c0_40 = arith.constant 0 : index
    %c0_41 = arith.constant 0 : index
    %44 = vector.load %arg2[%c2_39, %c0_40, %c0_41] : memref<3x1x256xf32, #tpu.memory_space<vmem>>, vector<1x1x256xf32>
    %45 = vector.shape_cast %44 : vector<1x1x256xf32> to vector<1x256xf32>
    %46 = vector.broadcast %45 : vector<1x256xf32> to vector<4x256xf32>
    %47 = arith.mulf %43, %46 : vector<4x256xf32>
    %c5 = arith.constant 5 : index
    %c0_42 = arith.constant 0 : index
    %c0_43 = arith.constant 0 : index
    %48 = vector.load %arg3[%c5, %c0_42, %c0_43] : memref<9x4x4xf32, #tpu.memory_space<vmem>>, vector<1x4x4xf32>
    %49 = vector.shape_cast %48 : vector<1x4x4xf32> to vector<4x4xf32>
    %cst_44 = arith.constant dense<0.000000e+00> : vector<4x256xf32>
    %50 = tpu.matmul %49, %47, %cst_44 {dimension_numbers = #tpu.dot_dimension_numbers<[1], [0], [0], [1], [0, 0, 1, 1], [], []>} : vector<4x4xf32>, vector<4x256xf32>, vector<4x256xf32> -> vector<4x256xf32>
    %51 = arith.addf %42, %50 : vector<4x256xf32>
    %c0_45 = arith.constant 0 : index
    %c143 = arith.constant 143 : index
    %52 = vector.load %arg8[%c0_45, %c143] : memref<4x512xf32, #tpu.memory_space<vmem>>, vector<4x256xf32>
    %c0_46 = arith.constant 0 : index
    %c0_47 = arith.constant 0 : index
    %c0_48 = arith.constant 0 : index
    %53 = vector.load %arg2[%c0_46, %c0_47, %c0_48] : memref<3x1x256xf32, #tpu.memory_space<vmem>>, vector<1x1x256xf32>
    %54 = vector.shape_cast %53 : vector<1x1x256xf32> to vector<1x256xf32>
    %55 = vector.broadcast %54 : vector<1x256xf32> to vector<4x256xf32>
    %56 = arith.mulf %52, %55 : vector<4x256xf32>
    %c6 = arith.constant 6 : index
    %c0_49 = arith.constant 0 : index
    %c0_50 = arith.constant 0 : index
    %57 = vector.load %arg3[%c6, %c0_49, %c0_50] : memref<9x4x4xf32, #tpu.memory_space<vmem>>, vector<1x4x4xf32>
    %58 = vector.shape_cast %57 : vector<1x4x4xf32> to vector<4x4xf32>
    %cst_51 = arith.constant dense<0.000000e+00> : vector<4x256xf32>
    %59 = tpu.matmul %58, %56, %cst_51 {dimension_numbers = #tpu.dot_dimension_numbers<[1], [0], [0], [1], [0, 0, 1, 1], [], []>} : vector<4x4xf32>, vector<4x256xf32>, vector<4x256xf32> -> vector<4x256xf32>
    %60 = arith.addf %51, %59 : vector<4x256xf32>
    %c0_52 = arith.constant 0 : index
    %c144 = arith.constant 144 : index
    %61 = vector.load %arg8[%c0_52, %c144] : memref<4x512xf32, #tpu.memory_space<vmem>>, vector<4x256xf32>
    %c7 = arith.constant 7 : index
    %c0_53 = arith.constant 0 : index
    %c0_54 = arith.constant 0 : index
    %62 = vector.load %arg3[%c7, %c0_53, %c0_54] : memref<9x4x4xf32, #tpu.memory_space<vmem>>, vector<1x4x4xf32>
    %63 = vector.shape_cast %62 : vector<1x4x4xf32> to vector<4x4xf32>
    %cst_55 = arith.constant dense<0.000000e+00> : vector<4x256xf32>
    %64 = tpu.matmul %63, %61, %cst_55 {dimension_numbers = #tpu.dot_dimension_numbers<[1], [0], [0], [1], [0, 0, 1, 1], [], []>} : vector<4x4xf32>, vector<4x256xf32>, vector<4x256xf32> -> vector<4x256xf32>
    %65 = arith.addf %60, %64 : vector<4x256xf32>
    %c0_56 = arith.constant 0 : index
    %c145 = arith.constant 145 : index
    %66 = vector.load %arg8[%c0_56, %c145] : memref<4x512xf32, #tpu.memory_space<vmem>>, vector<4x256xf32>
    %c2_57 = arith.constant 2 : index
    %c0_58 = arith.constant 0 : index
    %c0_59 = arith.constant 0 : index
    %67 = vector.load %arg2[%c2_57, %c0_58, %c0_59] : memref<3x1x256xf32, #tpu.memory_space<vmem>>, vector<1x1x256xf32>
    %68 = vector.shape_cast %67 : vector<1x1x256xf32> to vector<1x256xf32>
    %69 = vector.broadcast %68 : vector<1x256xf32> to vector<4x256xf32>
    %70 = arith.mulf %66, %69 : vector<4x256xf32>
    %c8 = arith.constant 8 : index
    %c0_60 = arith.constant 0 : index
    %c0_61 = arith.constant 0 : index
    %71 = vector.load %arg3[%c8, %c0_60, %c0_61] : memref<9x4x4xf32, #tpu.memory_space<vmem>>, vector<1x4x4xf32>
    %72 = vector.shape_cast %71 : vector<1x4x4xf32> to vector<4x4xf32>
    %cst_62 = arith.constant dense<0.000000e+00> : vector<4x256xf32>
    %73 = tpu.matmul %72, %70, %cst_62 {dimension_numbers = #tpu.dot_dimension_numbers<[1], [0], [0], [1], [0, 0, 1, 1], [], []>} : vector<4x4xf32>, vector<4x256xf32>, vector<4x256xf32> -> vector<4x256xf32>
    %74 = arith.addf %65, %73 : vector<4x256xf32>
    %c0_63 = arith.constant 0 : index
    %c0_64 = arith.constant 0 : index
    %75 = vector.load %arg4[%c0_63, %c0_64] : memref<4x1xf32, #tpu.memory_space<vmem>>, vector<4x1xf32>
    %76 = vector.broadcast %75 : vector<4x1xf32> to vector<4x256xf32>
    %77 = arith.addf %74, %76 : vector<4x256xf32>
    %cst_65 = arith.constant 0.000000e+00 : f32
    %78 = vector.broadcast %cst_65 : f32 to vector<4x256xf32>
    %79 = arith.maximumf %77, %78 : vector<4x256xf32>
    %cst_66 = arith.constant 0.000000e+00 : f32
    %80 = vector.broadcast %cst_66 : f32 to vector<4x128xf32>
    %c0_67 = arith.constant 0 : index
    %c0_68 = arith.constant 0 : index
    %81 = vector.load %arg9[%c0_67, %c0_68] : memref<4x512xf32, #tpu.memory_space<vmem>>, vector<4x128xf32>
    tpu.vector_store %arg9[%c0_67, %c0_68], %80 {strides = array<i32>} : memref<4x512xf32, #tpu.memory_space<vmem>>, vector<4x128xf32>,
    %cst_69 = arith.constant 0.000000e+00 : f32
    %82 = vector.broadcast %cst_69 : f32 to vector<4x128xf32>
    %c0_70 = arith.constant 0 : index
    %c384_71 = arith.constant 384 : index
    %83 = vector.load %arg9[%c0_70, %c384_71] : memref<4x512xf32, #tpu.memory_space<vmem>>, vector<4x128xf32>
    tpu.vector_store %arg9[%c0_70, %c384_71], %82 {strides = array<i32>} : memref<4x512xf32, #tpu.memory_space<vmem>>, vector<4x128xf32>,
    %c0_72 = arith.constant 0 : index
    %c128_73 = arith.constant 128 : index
    %84 = vector.load %arg9[%c0_72, %c128_73] : memref<4x512xf32, #tpu.memory_space<vmem>>, vector<4x256xf32>
    tpu.vector_store %arg9[%c0_72, %c128_73], %79 {strides = array<i32>} : memref<4x512xf32, #tpu.memory_space<vmem>>, vector<4x256xf32>,
    %c0_74 = arith.constant 0 : index
    %c111_75 = arith.constant 111 : index
    %85 = vector.load %arg9[%c0_74, %c111_75] : memref<4x512xf32, #tpu.memory_space<vmem>>, vector<4x256xf32>
    %c0_76 = arith.constant 0 : index
    %c0_77 = arith.constant 0 : index
    %c0_78 = arith.constant 0 : index
    %86 = vector.load %arg2[%c0_76, %c0_77, %c0_78] : memref<3x1x256xf32, #tpu.memory_space<vmem>>, vector<1x1x256xf32>
    %87 = vector.shape_cast %86 : vector<1x1x256xf32> to vector<1x256xf32>
    %88 = vector.broadcast %87 : vector<1x256xf32> to vector<4x256xf32>
    %89 = arith.mulf %85, %88 : vector<4x256xf32>
    %c0_79 = arith.constant 0 : index
    %c0_80 = arith.constant 0 : index
    %c0_81 = arith.constant 0 : index
    %90 = vector.load %arg5[%c0_79, %c0_80, %c0_81] : memref<9x4x4xf32, #tpu.memory_space<vmem>>, vector<1x4x4xf32>
    %91 = vector.shape_cast %90 : vector<1x4x4xf32> to vector<4x4xf32>
    %cst_82 = arith.constant dense<0.000000e+00> : vector<4x256xf32>
    %92 = tpu.matmul %91, %89, %cst_82 {dimension_numbers = #tpu.dot_dimension_numbers<[1], [0], [0], [1], [0, 0, 1, 1], [], []>} : vector<4x4xf32>, vector<4x256xf32>, vector<4x256xf32> -> vector<4x256xf32>
    %c0_83 = arith.constant 0 : index
    %c112_84 = arith.constant 112 : index
    %93 = vector.load %arg9[%c0_83, %c112_84] : memref<4x512xf32, #tpu.memory_space<vmem>>, vector<4x256xf32>
    %c1_85 = arith.constant 1 : index
    %c0_86 = arith.constant 0 : index
    %c0_87 = arith.constant 0 : index
    %94 = vector.load %arg5[%c1_85, %c0_86, %c0_87] : memref<9x4x4xf32, #tpu.memory_space<vmem>>, vector<1x4x4xf32>
    %95 = vector.shape_cast %94 : vector<1x4x4xf32> to vector<4x4xf32>
    %cst_88 = arith.constant dense<0.000000e+00> : vector<4x256xf32>
    %96 = tpu.matmul %95, %93, %cst_88 {dimension_numbers = #tpu.dot_dimension_numbers<[1], [0], [0], [1], [0, 0, 1, 1], [], []>} : vector<4x4xf32>, vector<4x256xf32>, vector<4x256xf32> -> vector<4x256xf32>
    %97 = arith.addf %92, %96 : vector<4x256xf32>
    %c0_89 = arith.constant 0 : index
    %c113_90 = arith.constant 113 : index
    %98 = vector.load %arg9[%c0_89, %c113_90] : memref<4x512xf32, #tpu.memory_space<vmem>>, vector<4x256xf32>
    %c2_91 = arith.constant 2 : index
    %c0_92 = arith.constant 0 : index
    %c0_93 = arith.constant 0 : index
    %99 = vector.load %arg2[%c2_91, %c0_92, %c0_93] : memref<3x1x256xf32, #tpu.memory_space<vmem>>, vector<1x1x256xf32>
    %100 = vector.shape_cast %99 : vector<1x1x256xf32> to vector<1x256xf32>
    %101 = vector.broadcast %100 : vector<1x256xf32> to vector<4x256xf32>
    %102 = arith.mulf %98, %101 : vector<4x256xf32>
    %c2_94 = arith.constant 2 : index
    %c0_95 = arith.constant 0 : index
    %c0_96 = arith.constant 0 : index
    %103 = vector.load %arg5[%c2_94, %c0_95, %c0_96] : memref<9x4x4xf32, #tpu.memory_space<vmem>>, vector<1x4x4xf32>
    %104 = vector.shape_cast %103 : vector<1x4x4xf32> to vector<4x4xf32>
    %cst_97 = arith.constant dense<0.000000e+00> : vector<4x256xf32>
    %105 = tpu.matmul %104, %102, %cst_97 {dimension_numbers = #tpu.dot_dimension_numbers<[1], [0], [0], [1], [0, 0, 1, 1], [], []>} : vector<4x4xf32>, vector<4x256xf32>, vector<4x256xf32> -> vector<4x256xf32>
    %106 = arith.addf %97, %105 : vector<4x256xf32>
    %c0_98 = arith.constant 0 : index
    %c127_99 = arith.constant 127 : index
    %107 = vector.load %arg9[%c0_98, %c127_99] : memref<4x512xf32, #tpu.memory_space<vmem>>, vector<4x256xf32>
    %c0_100 = arith.constant 0 : index
    %c0_101 = arith.constant 0 : index
    %c0_102 = arith.constant 0 : index
    %108 = vector.load %arg2[%c0_100, %c0_101, %c0_102] : memref<3x1x256xf32, #tpu.memory_space<vmem>>, vector<1x1x256xf32>
    %109 = vector.shape_cast %108 : vector<1x1x256xf32> to vector<1x256xf32>
    %110 = vector.broadcast %109 : vector<1x256xf32> to vector<4x256xf32>
    %111 = arith.mulf %107, %110 : vector<4x256xf32>
    %c3_103 = arith.constant 3 : index
    %c0_104 = arith.constant 0 : index
    %c0_105 = arith.constant 0 : index
    %112 = vector.load %arg5[%c3_103, %c0_104, %c0_105] : memref<9x4x4xf32, #tpu.memory_space<vmem>>, vector<1x4x4xf32>
    %113 = vector.shape_cast %112 : vector<1x4x4xf32> to vector<4x4xf32>
    %cst_106 = arith.constant dense<0.000000e+00> : vector<4x256xf32>
    %114 = tpu.matmul %113, %111, %cst_106 {dimension_numbers = #tpu.dot_dimension_numbers<[1], [0], [0], [1], [0, 0, 1, 1], [], []>} : vector<4x4xf32>, vector<4x256xf32>, vector<4x256xf32> -> vector<4x256xf32>
    %115 = arith.addf %106, %114 : vector<4x256xf32>
    %c0_107 = arith.constant 0 : index
    %c128_108 = arith.constant 128 : index
    %116 = vector.load %arg9[%c0_107, %c128_108] : memref<4x512xf32, #tpu.memory_space<vmem>>, vector<4x256xf32>
    %c4_109 = arith.constant 4 : index
    %c0_110 = arith.constant 0 : index
    %c0_111 = arith.constant 0 : index
    %117 = vector.load %arg5[%c4_109, %c0_110, %c0_111] : memref<9x4x4xf32, #tpu.memory_space<vmem>>, vector<1x4x4xf32>
    %118 = vector.shape_cast %117 : vector<1x4x4xf32> to vector<4x4xf32>
    %cst_112 = arith.constant dense<0.000000e+00> : vector<4x256xf32>
    %119 = tpu.matmul %118, %116, %cst_112 {dimension_numbers = #tpu.dot_dimension_numbers<[1], [0], [0], [1], [0, 0, 1, 1], [], []>} : vector<4x4xf32>, vector<4x256xf32>, vector<4x256xf32> -> vector<4x256xf32>
    %120 = arith.addf %115, %119 : vector<4x256xf32>
    %c0_113 = arith.constant 0 : index
    %c129_114 = arith.constant 129 : index
    %121 = vector.load %arg9[%c0_113, %c129_114] : memref<4x512xf32, #tpu.memory_space<vmem>>, vector<4x256xf32>
    %c2_115 = arith.constant 2 : index
    %c0_116 = arith.constant 0 : index
    %c0_117 = arith.constant 0 : index
    %122 = vector.load %arg2[%c2_115, %c0_116, %c0_117] : memref<3x1x256xf32, #tpu.memory_space<vmem>>, vector<1x1x256xf32>
    %123 = vector.shape_cast %122 : vector<1x1x256xf32> to vector<1x256xf32>
    %124 = vector.broadcast %123 : vector<1x256xf32> to vector<4x256xf32>
    %125 = arith.mulf %121, %124 : vector<4x256xf32>
    %c5_118 = arith.constant 5 : index
    %c0_119 = arith.constant 0 : index
    %c0_120 = arith.constant 0 : index
    %126 = vector.load %arg5[%c5_118, %c0_119, %c0_120] : memref<9x4x4xf32, #tpu.memory_space<vmem>>, vector<1x4x4xf32>
    %127 = vector.shape_cast %126 : vector<1x4x4xf32> to vector<4x4xf32>
    %cst_121 = arith.constant dense<0.000000e+00> : vector<4x256xf32>
    %128 = tpu.matmul %127, %125, %cst_121 {dimension_numbers = #tpu.dot_dimension_numbers<[1], [0], [0], [1], [0, 0, 1, 1], [], []>} : vector<4x4xf32>, vector<4x256xf32>, vector<4x256xf32> -> vector<4x256xf32>
    %129 = arith.addf %120, %128 : vector<4x256xf32>
    %c0_122 = arith.constant 0 : index
    %c143_123 = arith.constant 143 : index
    %130 = vector.load %arg9[%c0_122, %c143_123] : memref<4x512xf32, #tpu.memory_space<vmem>>, vector<4x256xf32>
    %c0_124 = arith.constant 0 : index
    %c0_125 = arith.constant 0 : index
    %c0_126 = arith.constant 0 : index
    %131 = vector.load %arg2[%c0_124, %c0_125, %c0_126] : memref<3x1x256xf32, #tpu.memory_space<vmem>>, vector<1x1x256xf32>
    %132 = vector.shape_cast %131 : vector<1x1x256xf32> to vector<1x256xf32>
    %133 = vector.broadcast %132 : vector<1x256xf32> to vector<4x256xf32>
    %134 = arith.mulf %130, %133 : vector<4x256xf32>
    %c6_127 = arith.constant 6 : index
    %c0_128 = arith.constant 0 : index
    %c0_129 = arith.constant 0 : index
    %135 = vector.load %arg5[%c6_127, %c0_128, %c0_129] : memref<9x4x4xf32, #tpu.memory_space<vmem>>, vector<1x4x4xf32>
    %136 = vector.shape_cast %135 : vector<1x4x4xf32> to vector<4x4xf32>
    %cst_130 = arith.constant dense<0.000000e+00> : vector<4x256xf32>
    %137 = tpu.matmul %136, %134, %cst_130 {dimension_numbers = #tpu.dot_dimension_numbers<[1], [0], [0], [1], [0, 0, 1, 1], [], []>} : vector<4x4xf32>, vector<4x256xf32>, vector<4x256xf32> -> vector<4x256xf32>
    %138 = arith.addf %129, %137 : vector<4x256xf32>
    %c0_131 = arith.constant 0 : index
    %c144_132 = arith.constant 144 : index
    %139 = vector.load %arg9[%c0_131, %c144_132] : memref<4x512xf32, #tpu.memory_space<vmem>>, vector<4x256xf32>
    %c7_133 = arith.constant 7 : index
    %c0_134 = arith.constant 0 : index
    %c0_135 = arith.constant 0 : index
    %140 = vector.load %arg5[%c7_133, %c0_134, %c0_135] : memref<9x4x4xf32, #tpu.memory_space<vmem>>, vector<1x4x4xf32>
    %141 = vector.shape_cast %140 : vector<1x4x4xf32> to vector<4x4xf32>
    %cst_136 = arith.constant dense<0.000000e+00> : vector<4x256xf32>
    %142 = tpu.matmul %141, %139, %cst_136 {dimension_numbers = #tpu.dot_dimension_numbers<[1], [0], [0], [1], [0, 0, 1, 1], [], []>} : vector<4x4xf32>, vector<4x256xf32>, vector<4x256xf32> -> vector<4x256xf32>
    %143 = arith.addf %138, %142 : vector<4x256xf32>
    %c0_137 = arith.constant 0 : index
    %c145_138 = arith.constant 145 : index
    %144 = vector.load %arg9[%c0_137, %c145_138] : memref<4x512xf32, #tpu.memory_space<vmem>>, vector<4x256xf32>
    %c2_139 = arith.constant 2 : index
    %c0_140 = arith.constant 0 : index
    %c0_141 = arith.constant 0 : index
    %145 = vector.load %arg2[%c2_139, %c0_140, %c0_141] : memref<3x1x256xf32, #tpu.memory_space<vmem>>, vector<1x1x256xf32>
    %146 = vector.shape_cast %145 : vector<1x1x256xf32> to vector<1x256xf32>
    %147 = vector.broadcast %146 : vector<1x256xf32> to vector<4x256xf32>
    %148 = arith.mulf %144, %147 : vector<4x256xf32>
    %c8_142 = arith.constant 8 : index
    %c0_143 = arith.constant 0 : index
    %c0_144 = arith.constant 0 : index
    %149 = vector.load %arg5[%c8_142, %c0_143, %c0_144] : memref<9x4x4xf32, #tpu.memory_space<vmem>>, vector<1x4x4xf32>
    %150 = vector.shape_cast %149 : vector<1x4x4xf32> to vector<4x4xf32>
    %cst_145 = arith.constant dense<0.000000e+00> : vector<4x256xf32>
    %151 = tpu.matmul %150, %148, %cst_145 {dimension_numbers = #tpu.dot_dimension_numbers<[1], [0], [0], [1], [0, 0, 1, 1], [], []>} : vector<4x4xf32>, vector<4x256xf32>, vector<4x256xf32> -> vector<4x256xf32>
    %152 = arith.addf %143, %151 : vector<4x256xf32>
    %153 = arith.addf %1, %152 : vector<4x256xf32>
    %c0_146 = arith.constant 0 : index
    %c0_147 = arith.constant 0 : index
    %154 = vector.load %arg6[%c0_146, %c0_147] : memref<4x1xf32, #tpu.memory_space<vmem>>, vector<4x1xf32>
    %155 = vector.broadcast %154 : vector<4x1xf32> to vector<4x256xf32>
    %156 = arith.addf %153, %155 : vector<4x256xf32>
    %cst_148 = arith.constant 0.000000e+00 : f32
    %157 = vector.broadcast %cst_148 : f32 to vector<4x256xf32>
    %158 = arith.cmpf oge, %156, %157 : vector<4x256xf32>
    %cst_149 = arith.constant 0.00999999977 : f32
    %159 = vector.broadcast %cst_149 : f32 to vector<4x256xf32>
    %160 = arith.mulf %159, %156 : vector<4x256xf32>
    %161 = arith.select %158, %156, %160 : vector<4x256xi1>, vector<4x256xf32>
    %c0_150 = arith.constant 0 : index
    %c0_151 = arith.constant 0 : index
    %c0_152 = arith.constant 0 : index
    %162 = vector.load %arg7[%c0_150, %c0_151, %c0_152] : memref<1x4x256xf32, #tpu.memory_space<vmem>>, vector<1x4x256xf32>
    %163 = vector.shape_cast %162 : vector<1x4x256xf32> to vector<4x256xf32>
    %164 = vector.shape_cast %161 : vector<4x256xf32> to vector<1x4x256xf32>
    tpu.vector_store %arg7[%c0_150, %c0_151, %c0_152], %164 {strides = array<i32>} : memref<1x4x256xf32, #tpu.memory_space<vmem>>, vector<1x4x256xf32>,
    return
  }
  func.func @transform_0(%arg0: i32) -> (i32, i32, i32) {
    %c0_i32 = arith.constant 0 : i32
    %c0_i32_0 = arith.constant 0 : i32
    %c0_i32_1 = arith.constant 0 : i32
    return %arg0, %c0_i32, %c0_i32_0 : i32, i32, i32
  }
  func.func @transform_1(%arg0: i32) -> (i32, i32, i32) {
    %c0_i32 = arith.constant 0 : i32
    %c0_i32_0 = arith.constant 0 : i32
    %c0_i32_1 = arith.constant 0 : i32
    %c0_i32_2 = arith.constant 0 : i32
    return %c0_i32, %c0_i32_0, %c0_i32_1 : i32, i32, i32
  }
  func.func @transform_2(%arg0: i32) -> (i32, i32, i32) {
    %c0_i32 = arith.constant 0 : i32
    %c0_i32_0 = arith.constant 0 : i32
    %c0_i32_1 = arith.constant 0 : i32
    %c0_i32_2 = arith.constant 0 : i32
    return %c0_i32, %c0_i32_0, %c0_i32_1 : i32, i32, i32
  }
  func.func @transform_3(%arg0: i32) -> (i32, i32) {
    %c0_i32 = arith.constant 0 : i32
    %c0_i32_0 = arith.constant 0 : i32
    %c0_i32_1 = arith.constant 0 : i32
    return %c0_i32, %c0_i32_0 : i32, i32
  }
  func.func @transform_4(%arg0: i32) -> (i32, i32, i32) {
    %c0_i32 = arith.constant 0 : i32
    %c0_i32_0 = arith.constant 0 : i32
    %c0_i32_1 = arith.constant 0 : i32
    %c0_i32_2 = arith.constant 0 : i32
    return %c0_i32, %c0_i32_0, %c0_i32_1 : i32, i32, i32
  }
  func.func @transform_5(%arg0: i32) -> (i32, i32) {
    %c0_i32 = arith.constant 0 : i32
    %c0_i32_0 = arith.constant 0 : i32
    %c0_i32_1 = arith.constant 0 : i32
    return %c0_i32, %c0_i32_0 : i32, i32
  }
  func.func @transform_6(%arg0: i32) -> (i32, i32, i32) {
    %c0_i32 = arith.constant 0 : i32
    %c0_i32_0 = arith.constant 0 : i32
    %c0_i32_1 = arith.constant 0 : i32
    return %arg0, %c0_i32, %c0_i32_0 : i32, i32, i32
  }
}

</mosaic_0001>

<llo_original>
// kernel: tile.17
$region0: #{tile.17}
  #allocation0 [shape = 's32[1]{0}', space=sflag, size = 0x4, scoped, tag = 'scoped memory for tile.17']
  %s0 = inlined_call_operand.vmem [shape: pred[16], index: 0, kind: input, shape index: {}]
  %s1 = inlined_call_operand.vmem [shape: pred[16,16], index: 1, kind: output, shape index: {}]
  // Predicated region
  $region2: #{tile.17} parent=0 // pred_check
    _
  $region3: #{tile.17} parent=0 // pred_check_branch
    %3 = sbr.rel (0) target = $region5
  $region4: #{tile.17} parent=0 // pred_region
    _
  $region5: #{tile.17} parent=0 // pred_fallthru
    _
  %v4 = vld [vmem:[%s0] ss:$0 sm:$0xff]
  %v6 = vshra.s32 %v4, 0
  %v7 = vand.u32 %v6, 255
  %v8 = vpack.c.b16 0, %v7
  %v9 = vpack.c.b8 0, %v8
  %11 = vst [vmem:[%s1] sm:$0x3] %v9
  %s12 = scalar_lea.vmem %s1, 2
  %v13 = vpack.c.b16 0, %v7
  %v14 = vpack.c.b8 0, %v13
  %16 = vst [vmem:[%s12] sm:$0x3] %v14

// kernel: resnet_block_forward.1
$region0: #{resnet_block_forward.1}
  #allocation0 [shape = 'u32[]', space=smem, size = 0x4, offset = 0x4, fixed_abs, tag = 'smem constant byte address 0x4 - core index']
  #allocation1 [shape = 'u32[144,128]{1,0:T(1,128)}', space=vmem, size = 0x12000, scoped, tag = 'internal scratch']
  #allocation2 [shape = 'f32[4,512]{1,0:T(4,128)}', space=vmem, size = 0x2000, scoped, tag = 'scratch operand']
  #allocation3 [shape = 'f32[4,512]{1,0:T(4,128)}', space=vmem, size = 0x2000, scoped, tag = 'scratch operand']
  %s0 = inlined_call_operand.vmem [shape: f32[2,4,256], index: 0, kind: input, shape index: {}]
  %s1 = inlined_call_operand.vmem [shape: f32[3,1,256], index: 1, kind: input, shape index: {}]
  %s2 = inlined_call_operand.vmem [shape: f32[9,4,4], index: 2, kind: input, shape index: {}]
  %s3 = inlined_call_operand.vmem [shape: f32[4,1], index: 3, kind: input, shape index: {}]
  %s4 = inlined_call_operand.vmem [shape: f32[9,4,4], index: 4, kind: input, shape index: {}]
  %s5 = inlined_call_operand.vmem [shape: f32[4,1], index: 5, kind: input, shape index: {}]
  %s6 = inlined_call_operand.vmem [shape: f32[2,4,256], index: 6, kind: output, shape index: {}]
  %s7 = sld [smem:[#allocation0]]
  $region57: #{resnet_block_forward.1} parent=0
    _
  %s9 = ssub.s32 1, %s7
  %s10 = scalar_select 0, %s9, %s7
  loop: start=0, step=1, limit=4
  $region2: #{resnet_block_forward.1} parent=0 // loop_pre_header
    _
  $region3: #{resnet_block_forward.1} parent=0 // loop_header
    %s12 = sphi 0, %s16
    %p13 = scmp.ge.s32.totalorder %s12, 4
    %s22 = sphi 0, %s24
    %s25 = sphi 0, %s22
    %s26 = sphi 0, %s25
    %s42 = sphi 0, %s26
    %s46 = sphi 0, %s46
    %s48 = sphi 0, %s46
    %s49 = sphi 0, %s48
    %s63 = sphi 0, %s49
    %s67 = sphi 0, %s67
    %s69 = sphi 0, %s67
    %s70 = sphi 0, %s69
    %s84 = sphi 0, %s70
    %s88 = sphi 0, %s88
    %s90 = sphi 0, %s88
    %s91 = sphi 0, %s90
    %s105 = sphi 0, %s91
    %s109 = sphi 0, %s109
    %s111 = sphi 0, %s109
    %s112 = sphi 0, %s111
    %s126 = sphi 0, %s112
    %s130 = sphi 0, %s130
    %s132 = sphi 0, %s130
    %s133 = sphi 0, %s132
    %s147 = sphi 0, %s133
    %s153 = sphi 0, %s155
    %s156 = sphi 0, %s153
    %s157 = sphi 0, %s156
    %s173 = sphi 0, %s157
  $region4: #{resnet_block_forward.1} parent=0 // loop_header_branch
    %15 = sbr.rel (%p13) target = $region8
  $region5: #{resnet_block_forward.1} parent=0 // loop_body
    %s17 = ssub.s32 %s12, 1
    %s18 = ssub.s32 %s12, 2
    %s19 = sadd.s32 %s12, 1
    %s20 = ssub.s32 %s12, %s19
    %p21 = scmp.eq.s32.totalorder %s20, 0
    %s23 = sadd.s32 %s22, 1
    %s24 = scalar_select %p21, %s22, %s23
    %p27 = pneg %p21
    %p28 = scmp.eq.s32.totalorder %s12, 1
    %p29 = por %p27, %p28
    %p30 = scmp.ne.s32.totalorder %s22, %s25
    %p31 = scmp.eq.s32.totalorder %s12, 0
    %p32 = por %p30, %p31
    %p33 = scmp.ne.s32.totalorder %s22, %s25
    %p34 = scmp.eq.s32.totalorder %s17, 1
    %p35 = por %p33, %p34
    %p36 = scmp.ne.s32.totalorder %s25, %s26
    %p37 = scmp.eq.s32.totalorder %s17, 0
    %p38 = por %p36, %p37
    %p39 = scmp.ne.s32.totalorder %s25, %s26
    %p40 = scmp.eq.s32.totalorder %s18, 1
    %p41 = por %p39, %p40
    %p43 = scmp.ne.s32.totalorder %s26, %s42
    %p44 = scmp.eq.s32.totalorder %s18, 0
    %p45 = por %p43, %p44
    %s47 = sadd.s32 %s46, 1
    %p50 = scmp.eq.s32.totalorder %s12, 1
    %p51 = scmp.ne.s32.totalorder %s46, %s48
    %p52 = scmp.eq.s32.totalorder %s12, 0
    %p53 = por %p51, %p52
    %p54 = scmp.ne.s32.totalorder %s46, %s48
    %p55 = scmp.eq.s32.totalorder %s17, 1
    %p56 = por %p54, %p55
    %p57 = scmp.ne.s32.totalorder %s48, %s49
    %p58 = scmp.eq.s32.totalorder %s17, 0
    %p59 = por %p57, %p58
    %p60 = scmp.ne.s32.totalorder %s48, %s49
    %p61 = scmp.eq.s32.totalorder %s18, 1
    %p62 = por %p60, %p61
    %p64 = scmp.ne.s32.totalorder %s49, %s63
    %p65 = scmp.eq.s32.totalorder %s18, 0
    %p66 = por %p64, %p65
    %s68 = sadd.s32 %s67, 1
    %p71 = scmp.eq.s32.totalorder %s12, 1
    %p72 = scmp.ne.s32.totalorder %s67, %s69
    %p73 = scmp.eq.s32.totalorder %s12, 0
    %p74 = por %p72, %p73
    %p75 = scmp.ne.s32.totalorder %s67, %s69
    %p76 = scmp.eq.s32.totalorder %s17, 1
    %p77 = por %p75, %p76
    %p78 = scmp.ne.s32.totalorder %s69, %s70
    %p79 = scmp.eq.s32.totalorder %s17, 0
    %p80 = por %p78, %p79
    %p81 = scmp.ne.s32.totalorder %s69, %s70
    %p82 = scmp.eq.s32.totalorder %s18, 1
    %p83 = por %p81, %p82
    %p85 = scmp.ne.s32.totalorder %s70, %s84
    %p86 = scmp.eq.s32.totalorder %s18, 0
    %p87 = por %p85, %p86
    %s89 = sadd.s32 %s88, 1
    %p92 = scmp.eq.s32.totalorder %s12, 1
    %p93 = scmp.ne.s32.totalorder %s88, %s90
    %p94 = scmp.eq.s32.totalorder %s12, 0
    %p95 = por %p93, %p94
    %p96 = scmp.ne.s32.totalorder %s88, %s90
    %p97 = scmp.eq.s32.totalorder %s17, 1
    %p98 = por %p96, %p97
    %p99 = scmp.ne.s32.totalorder %s90, %s91
    %p100 = scmp.eq.s32.totalorder %s17, 0
    %p101 = por %p99, %p100
    %p102 = scmp.ne.s32.totalorder %s90, %s91
    %p103 = scmp.eq.s32.totalorder %s18, 1
    %p104 = por %p102, %p103
    %p106 = scmp.ne.s32.totalorder %s91, %s105
    %p107 = scmp.eq.s32.totalorder %s18, 0
    %p108 = por %p106, %p107
    %s110 = sadd.s32 %s109, 1
    %p113 = scmp.eq.s32.totalorder %s12, 1
    %p114 = scmp.ne.s32.totalorder %s109, %s111
    %p115 = scmp.eq.s32.totalorder %s12, 0
    %p116 = por %p114, %p115
    %p117 = scmp.ne.s32.totalorder %s109, %s111
    %p118 = scmp.eq.s32.totalorder %s17, 1
    %p119 = por %p117, %p118
    %p120 = scmp.ne.s32.totalorder %s111, %s112
    %p121 = scmp.eq.s32.totalorder %s17, 0
    %p122 = por %p120, %p121
    %p123 = scmp.ne.s32.totalorder %s111, %s112
    %p124 = scmp.eq.s32.totalorder %s18, 1
    %p125 = por %p123, %p124
    %p127 = scmp.ne.s32.totalorder %s112, %s126
    %p128 = scmp.eq.s32.totalorder %s18, 0
    %p129 = por %p127, %p128
    %s131 = sadd.s32 %s130, 1
    %p134 = scmp.eq.s32.totalorder %s12, 1
    %p135 = scmp.ne.s32.totalorder %s130, %s132
    %p136 = scmp.eq.s32.totalorder %s12, 0
    %p137 = por %p135, %p136
    %p138 = scmp.ne.s32.totalorder %s130, %s132
    %p139 = scmp.eq.s32.totalorder %s17, 1
    %p140 = por %p138, %p139
    %p141 = scmp.ne.s32.totalorder %s132, %s133
    %p142 = scmp.eq.s32.totalorder %s17, 0
    %p143 = por %p141, %p142
    %p144 = scmp.ne.s32.totalorder %s132, %s133
    %p145 = scmp.eq.s32.totalorder %s18, 1
    %p146 = por %p144, %p145
    %p148 = scmp.ne.s32.totalorder %s133, %s147
    %p149 = scmp.eq.s32.totalorder %s18, 0
    %p150 = por %p148, %p149
    %s151 = ssub.s32 %s12, %s19
    %p152 = scmp.eq.s32.totalorder %s151, 0
    %s154 = sadd.s32 %s153, 1
    %s155 = scalar_select %p152, %s153, %s154
    %p158 = pneg %p152
    %p159 = scmp.eq.s32.totalorder %s12, 1
    %p160 = por %p158, %p159
    %p161 = scmp.ne.s32.totalorder %s153, %s156
    %p162 = scmp.eq.s32.totalorder %s12, 0
    %p163 = por %p161, %p162
    %p164 = scmp.ne.s32.totalorder %s153, %s156
    %p165 = scmp.eq.s32.totalorder %s17, 1
    %p166 = por %p164, %p165
    %p167 = scmp.ne.s32.totalorder %s156, %s157
    %p168 = scmp.eq.s32.totalorder %s17, 0
    %p169 = por %p167, %p168
    %p170 = scmp.ne.s32.totalorder %s156, %s157
    %p171 = scmp.eq.s32.totalorder %s18, 1
    %p172 = por %p170, %p171
    %p174 = scmp.ne.s32.totalorder %s157, %s173
    %p175 = scmp.eq.s32.totalorder %s18, 0
    %p176 = por %p174, %p175
    %p177 = scmp.le.s32.totalorder 1, %s12
    %p178 = scmp.lt.s32.totalorder %s12, 3
    %p179 = pnand %p177, %p178
    %p180 = pneg %p179
    // Predicated region
    $region9: #{resnet_block_forward.1} parent=5 // pred_check
      _
    $region10: #{resnet_block_forward.1} parent=5 // pred_check_branch
      %182 = sbr.rel (%p179) target = $region12
    $region11: #{resnet_block_forward.1} parent=5 // pred_region
      %s183 = ssub.s32 %s12, 1
      // Predicated region
      $region13: #{resnet_block_forward.1} parent=11 // pred_check
        %p184 = pneg %p59
      $region14: #{resnet_block_forward.1} parent=11 // pred_check_branch
        %186 = sbr.rel (%p184) target = $region16
      $region15: #{resnet_block_forward.1} parent=11 // pred_region
        _
      $region16: #{resnet_block_forward.1} parent=11 // pred_fallthru
        _
      // Predicated region
      $region17: #{resnet_block_forward.1} parent=11 // pred_check
        %p187 = pneg %p80
      $region18: #{resnet_block_forward.1} parent=11 // pred_check_branch
        %189 = sbr.rel (%p187) target = $region20
      $region19: #{resnet_block_forward.1} parent=11 // pred_region
        _
      $region20: #{resnet_block_forward.1} parent=11 // pred_fallthru
        _
      // Predicated region
      $region21: #{resnet_block_forward.1} parent=11 // pred_check
        %p190 = pneg %p101
      $region22: #{resnet_block_forward.1} parent=11 // pred_check_branch
        %192 = sbr.rel (%p190) target = $region24
      $region23: #{resnet_block_forward.1} parent=11 // pred_region
        _
      $region24: #{resnet_block_forward.1} parent=11 // pred_fallthru
        _
      // Predicated region
      $region25: #{resnet_block_forward.1} parent=11 // pred_check
        %p193 = pneg %p122
      $region26: #{resnet_block_forward.1} parent=11 // pred_check_branch
        %195 = sbr.rel (%p193) target = $region28
      $region27: #{resnet_block_forward.1} parent=11 // pred_region
        _
      $region28: #{resnet_block_forward.1} parent=11 // pred_fallthru
        _
      // Predicated region
      $region29: #{resnet_block_forward.1} parent=11 // pred_check
        %p196 = pneg %p143
      $region30: #{resnet_block_forward.1} parent=11 // pred_check_branch
        %198 = sbr.rel (%p196) target = $region32
      $region31: #{resnet_block_forward.1} parent=11 // pred_region
        _
      $region32: #{resnet_block_forward.1} parent=11 // pred_fallthru
        _
    $region12: #{resnet_block_forward.1} parent=5 // pred_fallthru
      _
    %p199 = scmp.lt.s32.totalorder %s12, 2
    // Predicated region
    $region33: #{resnet_block_forward.1} parent=5 // pred_check
      %p200 = pneg %p199
    $region34: #{resnet_block_forward.1} parent=5 // pred_check_branch
      %202 = sbr.rel (%p200) target = $region36
    $region35: #{resnet_block_forward.1} parent=5 // pred_region
      // Predicated region
      $region37: #{resnet_block_forward.1} parent=35 // pred_check
        %p203 = pneg %p32
      $region38: #{resnet_block_forward.1} parent=35 // pred_check_branch
        %205 = sbr.rel (%p203) target = $region40
      $region39: #{resnet_block_forward.1} parent=35 // pred_region
        %p206 = scmp.lt.s32.totalorder %s12, 1
        %s207 = scalar_select %p206, %s12, 1
        %s208 = smul.addr %s207, 2
        %s209 = smul.addr %s208, 4
        %s210 = scalar_lea.vmem %s0, %s209
      $region40: #{resnet_block_forward.1} parent=35 // pred_fallthru
        _
    $region36: #{resnet_block_forward.1} parent=5 // pred_fallthru
      _
    %p211 = scmp.le.s32.totalorder 1, %s12
    %p212 = scmp.lt.s32.totalorder %s12, 3
    %p213 = pnand %p211, %p212
    %p214 = pneg %p213
    // Predicated region
    $region41: #{resnet_block_forward.1} parent=5 // pred_check
      _
    $region42: #{resnet_block_forward.1} parent=5 // pred_check_branch
      %216 = sbr.rel (%p213) target = $region44
    $region43: #{resnet_block_forward.1} parent=5 // pred_region
      %s217 = ssub.s32 %s12, 1
      %p218 = scmp.lt.s32.totalorder %s17, 1
      %s219 = scalar_select %p218, %s17, 1
      %s220 = smul.addr %s219, 2
      %s221 = smul.addr %s220, 4
      %s222 = scalar_lea.vmem %s0, %s221
      %p223 = pneg %p38
      %p224 = pneg %p35
      %p225 = pneg %p59
      %p226 = pneg %p56
      %p227 = pneg %p80
      %p228 = pneg %p77
      %p229 = pneg %p101
      %p230 = pneg %p98
      %p231 = pneg %p122
      %p232 = pneg %p119
      %p233 = pneg %p143
      %p234 = pneg %p140
      %p235 = pneg %p169
      %p236 = pneg %p166
      %p237 = scmp.lt.s32.totalorder %s17, 1
      %s238 = scalar_select %p237, %s17, 1
      %s239 = smul.addr %s238, 2
      %s240 = smul.addr %s239, 4
      %s241 = scalar_lea.vmem %s6, %s240
      %p242 = scmp.lt.s32.totalorder %s17, 1
      %s243 = scalar_select %p242, %s17, 1
      %s244 = smul.addr %s243, 2
      %s245 = smul.addr %s244, 4
      %s246 = scalar_lea.vmem %s0, %s245
      %p247 = scmp.lt.s32.totalorder %s17, 1
      %s248 = scalar_select %p247, %s17, 1
      %s249 = smul.addr %s248, 2
      %s250 = smul.addr %s249, 4
      %s251 = scalar_lea.vmem %s6, %s250
      %v252 = vld [vmem:[%s246] sm:$0xff]
      %253 = vst [vmem:[#allocation2] sm:$0xf] 0.0
      %254 = vst [vmem:[#allocation2 + $0xc] sm:$0xf] 0.0
      %255 = vst [vmem:[#allocation2 + $0x4] sm:$0xff] %v252
      %v256 = vld [vmem:[#allocation2] sm:$0xff]
      %v257 = vld [vmem:[#allocation2 + $0x8] sm:$0xf]
      %v258 = vld [vmem:[%s1] sm:$0x3]
      %v260 = vlaneseq
      %v261 = vshrl.u32 %v260, 7
      %v262 = vsub.s32 0, %v261
      %v263 = vrot.slane %v258, %v262
      %v264 = vlaneseq
      %v265 = vshrl.u32 %v264, 7
      %v266 = vsub.s32 1, %v265
      %v267 = vrot.slane %v258, %v266
      %v268 = vcombine.low %v263, %v267
      %269 = vrot.lane.b32.xlu0 %v268, 111
      %v270 = vpop.permute.xlu0 %269
      %v271 = vrot.slane %v270, 4
      %vm272 = vcmask 908288
      %v273 = vsel %vm272, %v271, %v270
      %v276 = vmul.f32 %v256, %v273
      %v277 = vmul.f32 %v257, %v271
      %v278 = vld [vmem:[%s2] sm:$0xf]
      %s279 = scalar_lea.vmem %s2, 4
      %v280 = vld [vmem:[%s279] sm:$0xf]
      %v283 = vcombine.high %v256, %v256
      %284 = vrot.lane.b32.xlu0 %v256, 16
      %v285 = vpop.permute.xlu0 %284
      %286 = vrot.lane.b32.xlu0 %v283, 16
      %v287 = vpop.permute.xlu0 %286
      %288 = vrot.lane.b32.xlu0 %v257, 16
      %v289 = vpop.permute.xlu0 %288
      %vm290 = vcmask 130048
      %v291 = vsel %vm290, %v285, %v287
      %v292 = vsel %vm290, %v287, %v289
      %vm293 = vcmask 31744
      %v295 = vsel %vm293, %v280, 0
      %vm297 = vcmask 1043456
      %v298 = vsel %vm297, %v291, 0
      %v300 = vsel %vm297, %v292, 0
      %302 = vmatprep.subr.mxu0 %v300
      %303 = vmatpush1.msra.mxu0 %v298
      %304 = vmatprep.subr.mxu0 0.0
      %305 = vmatpush1.msra.mxu0 0.0
      %306 = vmatprep.subr.mxu0 0.0
      %307 = vmatpush1.msra.mxu0 0.0
      %308 = vmatprep.subr.mxu0 0.0
      %309 = vmatpush1.msra.mxu0 0.0
      %310 = vmatprep.subr.mxu0 0.0
      %311 = vmatpush1.msra.mxu0 0.0
      %312 = vmatprep.subr.mxu0 0.0
      %313 = vmatpush1.msra.mxu0 0.0
      %314 = vmatprep.subr.mxu0 0.0
      %315 = vmatpush1.msra.mxu0 0.0
      %316 = vmatprep.subr.mxu0 0.0
      %317 = vmatpush1.msra.mxu0 0.0
      %318 = vmatprep.subr.mxu0 0.0
      %319 = vmatpush1.msra.mxu0 0.0
      %320 = vmatprep.subr.mxu0 0.0
      %321 = vmatpush1.msra.mxu0 0.0
      %322 = vmatprep.subr.mxu0 0.0
      %323 = vmatpush1.msra.mxu0 0.0
      %324 = vmatprep.subr.mxu0 0.0
      %325 = vmatpush1.msra.mxu0 0.0
      %326 = vmatprep.subr.mxu0 0.0
      %327 = vmatpush1.msra.mxu0 0.0
      %328 = vmatprep.subr.mxu0 0.0
      %329 = vmatpush1.msra.mxu0 0.0
      %330 = vmatprep.subr.mxu0 0.0
      %331 = vmatpush1.msra.mxu0 0.0
      %332 = vmatprep.subr.mxu0 0.0
      %333 = vmatpush1.msra.mxu0 0.0
      %334 = vmatprep.subr.mxu0 0.0
      %335 = vmatpush1.msra.mxu0 0.0
      %336 = vmatprep.subr.mxu0 0.0
      %337 = vmatpush1.msra.mxu0 0.0
      %338 = vmatprep.subr.mxu0 0.0
      %339 = vmatpush1.msra.mxu0 0.0
      %340 = vmatprep.subr.mxu0 0.0
      %341 = vmatpush1.msra.mxu0 0.0
      %342 = vmatprep.subr.mxu0 0.0
      %343 = vmatpush1.msra.mxu0 0.0
      %344 = vmatprep.subr.mxu0 0.0
      %345 = vmatpush1.msra.mxu0 0.0
      %346 = vmatprep.subr.mxu0 0.0
      %347 = vmatpush1.msra.mxu0 0.0
      %348 = vmatprep.subr.mxu0 0.0
      %349 = vmatpush1.msra.mxu0 0.0
      %350 = vmatprep.subr.mxu0 0.0
      %351 = vmatpush1.msra.mxu0 0.0
      %352 = vmatprep.subr.mxu0 0.0
      %353 = vmatpush1.msra.mxu0 0.0
      %354 = vmatprep.subr.mxu0 0.0
      %355 = vmatpush1.msra.mxu0 0.0
      %356 = vmatprep.subr.mxu0 0.0
      %357 = vmatpush1.msra.mxu0 0.0
      %358 = vmatprep.subr.mxu0 0.0
      %359 = vmatpush1.msra.mxu0 0.0
      %360 = vmatprep.subr.mxu0 0.0
      %361 = vmatpush1.msra.mxu0 0.0
      %362 = vmatprep.subr.mxu0 0.0
      %363 = vmatpush1.msra.mxu0 0.0
      %364 = vmatprep.subr.mxu0 0.0
      %365 = vmatpush1.msra.mxu0 0.0
      %366 = vmatprep.mubr.f32.mxu0 0.0
      %367 = vmatmul.mubr.f32.gmra.mrb[0].mxu0 %v295
      %v368 = vpop.f32.mrb[0].mxu0
      %v369 = vadd.f32 0.0, %v368
      %v370 = vpop.f32.mrb[0].mxu0
      %v371 = vadd.f32 0.0, %v370
      %372 = vdwg.mxu0
      %v375 = vcombine.high %v276, %v276
      %376 = vrot.lane.b32.xlu0 %v276, 17
      %v377 = vpop.permute.xlu0 %376
      %378 = vrot.lane.b32.xlu0 %v375, 17
      %v379 = vpop.permute.xlu0 %378
      %380 = vrot.lane.b32.xlu0 %v277, 17
      %v381 = vpop.permute.xlu0 %380
      %vm382 = vcmask 138240
      %v383 = vsel %vm382, %v377, %v379
      %v384 = vsel %vm382, %v379, %v381
      %v386 = vsel %vm293, %v278, 0
      %v388 = vsel %vm297, %v383, 0
      %v390 = vsel %vm297, %v384, 0
      %392 = vmatprep.subr.mxu0 %v390
      %393 = vmatpush1.msra.mxu0 %v388
      %394 = vmatprep.subr.mxu0 0.0
      %395 = vmatpush1.msra.mxu0 0.0
      %396 = vmatprep.subr.mxu0 0.0
      %397 = vmatpush1.msra.mxu0 0.0
      %398 = vmatprep.subr.mxu0 0.0
      %399 = vmatpush1.msra.mxu0 0.0
      %400 = vmatprep.subr.mxu0 0.0
      %401 = vmatpush1.msra.mxu0 0.0
      %402 = vmatprep.subr.mxu0 0.0
      %403 = vmatpush1.msra.mxu0 0.0
      %404 = vmatprep.subr.mxu0 0.0
      %405 = vmatpush1.msra.mxu0 0.0
      %406 = vmatprep.subr.mxu0 0.0
      %407 = vmatpush1.msra.mxu0 0.0
      %408 = vmatprep.subr.mxu0 0.0
      %409 = vmatpush1.msra.mxu0 0.0
      %410 = vmatprep.subr.mxu0 0.0
      %411 = vmatpush1.msra.mxu0 0.0
      %412 = vmatprep.subr.mxu0 0.0
      %413 = vmatpush1.msra.mxu0 0.0
      %414 = vmatprep.subr.mxu0 0.0
      %415 = vmatpush1.msra.mxu0 0.0
      %416 = vmatprep.subr.mxu0 0.0
      %417 = vmatpush1.msra.mxu0 0.0
      %418 = vmatprep.subr.mxu0 0.0
      %419 = vmatpush1.msra.mxu0 0.0
      %420 = vmatprep.subr.mxu0 0.0
      %421 = vmatpush1.msra.mxu0 0.0
      %422 = vmatprep.subr.mxu0 0.0
      %423 = vmatpush1.msra.mxu0 0.0
      %424 = vmatprep.subr.mxu0 0.0
      %425 = vmatpush1.msra.mxu0 0.0
      %426 = vmatprep.subr.mxu0 0.0
      %427 = vmatpush1.msra.mxu0 0.0
      %428 = vmatprep.subr.mxu0 0.0
      %429 = vmatpush1.msra.mxu0 0.0
      %430 = vmatprep.subr.mxu0 0.0
      %431 = vmatpush1.msra.mxu0 0.0
      %432 = vmatprep.subr.mxu0 0.0
      %433 = vmatpush1.msra.mxu0 0.0
      %434 = vmatprep.subr.mxu0 0.0
      %435 = vmatpush1.msra.mxu0 0.0
      %436 = vmatprep.subr.mxu0 0.0
      %437 = vmatpush1.msra.mxu0 0.0
      %438 = vmatprep.subr.mxu0 0.0
      %439 = vmatpush1.msra.mxu0 0.0
      %440 = vmatprep.subr.mxu0 0.0
      %441 = vmatpush1.msra.mxu0 0.0
      %442 = vmatprep.subr.mxu0 0.0
      %443 = vmatpush1.msra.mxu0 0.0
      %444 = vmatprep.subr.mxu0 0.0
      %445 = vmatpush1.msra.mxu0 0.0
      %446 = vmatprep.subr.mxu0 0.0
      %447 = vmatpush1.msra.mxu0 0.0
      %448 = vmatprep.subr.mxu0 0.0
      %449 = vmatpush1.msra.mxu0 0.0
      %450 = vmatprep.subr.mxu0 0.0
      %451 = vmatpush1.msra.mxu0 0.0
      %452 = vmatprep.subr.mxu0 0.0
      %453 = vmatpush1.msra.mxu0 0.0
      %454 = vmatprep.subr.mxu0 0.0
      %455 = vmatpush1.msra.mxu0 0.0
      %456 = vmatprep.mubr.f32.mxu0 0.0
      %457 = vmatmul.mubr.f32.gmra.mrb[0].mxu0 %v386
      %v458 = vpop.f32.mrb[0].mxu0
      %v459 = vadd.f32 %v369, %v458
      %v460 = vpop.f32.mrb[0].mxu0
      %v461 = vadd.f32 %v371, %v460
      %462 = vdwg.mxu0
      %v463 = vld [vmem:[#allocation2] sm:$0xff]
      %v464 = vld [vmem:[#allocation2 + $0x8] sm:$0xf]
      %s465 = scalar_lea.vmem %s1, 4
      %v466 = vld [vmem:[%s465] sm:$0x3]
      %v468 = vlaneseq
      %v469 = vshrl.u32 %v468, 7
      %v470 = vsub.s32 0, %v469
      %v471 = vrot.slane %v466, %v470
      %v472 = vlaneseq
      %v473 = vshrl.u32 %v472, 7
      %v474 = vsub.s32 1, %v473
      %v475 = vrot.slane %v466, %v474
      %v476 = vcombine.low %v471, %v475
      %477 = vrot.lane.b32.xlu0 %v476, 113
      %v478 = vpop.permute.xlu0 %477
      %v479 = vrot.slane %v478, 4
      %vm480 = vcmask 924672
      %v481 = vsel %vm480, %v479, %v478
      %v484 = vmul.f32 %v463, %v481
      %v485 = vmul.f32 %v464, %v479
      %s486 = scalar_lea.vmem %s2, 8
      %v487 = vld [vmem:[%s486] sm:$0xf]
      %v490 = vcombine.high %v484, %v484
      %491 = vrot.lane.b32.xlu0 %v484, 15
      %v492 = vpop.permute.xlu0 %491
      %493 = vrot.lane.b32.xlu0 %v490, 15
      %v494 = vpop.permute.xlu0 %493
      %495 = vrot.lane.b32.xlu0 %v485, 15
      %v496 = vpop.permute.xlu0 %495
      %vm497 = vcmask 121856
      %v498 = vsel %vm497, %v492, %v494
      %v499 = vsel %vm497, %v494, %v496
      %v501 = vsel %vm293, %v487, 0
      %v503 = vsel %vm297, %v498, 0
      %v505 = vsel %vm297, %v499, 0
      %507 = vmatprep.subr.mxu0 %v505
      %508 = vmatpush1.msra.mxu0 %v503
      %509 = vmatprep.subr.mxu0 0.0
      %510 = vmatpush1.msra.mxu0 0.0
      %511 = vmatprep.subr.mxu0 0.0
      %512 = vmatpush1.msra.mxu0 0.0
      %513 = vmatprep.subr.mxu0 0.0
      %514 = vmatpush1.msra.mxu0 0.0
      %515 = vmatprep.subr.mxu0 0.0
      %516 = vmatpush1.msra.mxu0 0.0
      %517 = vmatprep.subr.mxu0 0.0
      %518 = vmatpush1.msra.mxu0 0.0
      %519 = vmatprep.subr.mxu0 0.0
      %520 = vmatpush1.msra.mxu0 0.0
      %521 = vmatprep.subr.mxu0 0.0
      %522 = vmatpush1.msra.mxu0 0.0
      %523 = vmatprep.subr.mxu0 0.0
      %524 = vmatpush1.msra.mxu0 0.0
      %525 = vmatprep.subr.mxu0 0.0
      %526 = vmatpush1.msra.mxu0 0.0
      %527 = vmatprep.subr.mxu0 0.0
      %528 = vmatpush1.msra.mxu0 0.0
      %529 = vmatprep.subr.mxu0 0.0
      %530 = vmatpush1.msra.mxu0 0.0
      %531 = vmatprep.subr.mxu0 0.0
      %532 = vmatpush1.msra.mxu0 0.0
      %533 = vmatprep.subr.mxu0 0.0
      %534 = vmatpush1.msra.mxu0 0.0
      %535 = vmatprep.subr.mxu0 0.0
      %536 = vmatpush1.msra.mxu0 0.0
      %537 = vmatprep.subr.mxu0 0.0
      %538 = vmatpush1.msra.mxu0 0.0
      %539 = vmatprep.subr.mxu0 0.0
      %540 = vmatpush1.msra.mxu0 0.0
      %541 = vmatprep.subr.mxu0 0.0
      %542 = vmatpush1.msra.mxu0 0.0
      %543 = vmatprep.subr.mxu0 0.0
      %544 = vmatpush1.msra.mxu0 0.0
      %545 = vmatprep.subr.mxu0 0.0
      %546 = vmatpush1.msra.mxu0 0.0
      %547 = vmatprep.subr.mxu0 0.0
      %548 = vmatpush1.msra.mxu0 0.0
      %549 = vmatprep.subr.mxu0 0.0
      %550 = vmatpush1.msra.mxu0 0.0
      %551 = vmatprep.subr.mxu0 0.0
      %552 = vmatpush1.msra.mxu0 0.0
      %553 = vmatprep.subr.mxu0 0.0
      %554 = vmatpush1.msra.mxu0 0.0
      %555 = vmatprep.subr.mxu0 0.0
      %556 = vmatpush1.msra.mxu0 0.0
      %557 = vmatprep.subr.mxu0 0.0
      %558 = vmatpush1.msra.mxu0 0.0
      %559 = vmatprep.subr.mxu0 0.0
      %560 = vmatpush1.msra.mxu0 0.0
      %561 = vmatprep.subr.mxu0 0.0
      %562 = vmatpush1.msra.mxu0 0.0
      %563 = vmatprep.subr.mxu0 0.0
      %564 = vmatpush1.msra.mxu0 0.0
      %565 = vmatprep.subr.mxu0 0.0
      %566 = vmatpush1.msra.mxu0 0.0
      %567 = vmatprep.subr.mxu0 0.0
      %568 = vmatpush1.msra.mxu0 0.0
      %569 = vmatprep.subr.mxu0 0.0
      %570 = vmatpush1.msra.mxu0 0.0
      %571 = vmatprep.mubr.f32.mxu0 0.0
      %572 = vmatmul.mubr.f32.gmra.mrb[0].mxu0 %v501
      %v573 = vpop.f32.mrb[0].mxu0
      %v574 = vadd.f32 0.0, %v573
      %v575 = vpop.f32.mrb[0].mxu0
      %v576 = vadd.f32 0.0, %v575
      %577 = vdwg.mxu0
      %v578 = vadd.f32 %v459, %v574
      %v579 = vadd.f32 %v461, %v576
      %v580 = vld [vmem:[#allocation2] sm:$0xff]
      %v581 = vld [vmem:[#allocation2 + $0x8] sm:$0xf]
      %582 = vrot.lane.b32.xlu0 %v268, 127
      %v583 = vpop.permute.xlu0 %582
      %v584 = vrot.slane %v583, 4
      %vm585 = vcmask 1039360
      %v586 = vsel %vm585, %v584, %v583
      %v589 = vmul.f32 %v580, %v586
      %v590 = vmul.f32 %v581, %v584
      %s591 = scalar_lea.vmem %s2, 12
      %v592 = vld [vmem:[%s591] sm:$0xf]
      %v595 = vcombine.high %v589, %v589
      %596 = vrot.lane.b32.xlu0 %v589, 1
      %v597 = vpop.permute.xlu0 %596
      %598 = vrot.lane.b32.xlu0 %v595, 1
      %v599 = vpop.permute.xlu0 %598
      %600 = vrot.lane.b32.xlu0 %v590, 1
      %v601 = vpop.permute.xlu0 %600
      %vm602 = vcmask 7168
      %v603 = vsel %vm602, %v597, %v599
      %v604 = vsel %vm602, %v599, %v601
      %v606 = vsel %vm293, %v592, 0
      %v608 = vsel %vm297, %v603, 0
      %v610 = vsel %vm297, %v604, 0
      %612 = vmatprep.subr.mxu0 %v610
      %613 = vmatpush1.msra.mxu0 %v608
      %614 = vmatprep.subr.mxu0 0.0
      %615 = vmatpush1.msra.mxu0 0.0
      %616 = vmatprep.subr.mxu0 0.0
      %617 = vmatpush1.msra.mxu0 0.0
      %618 = vmatprep.subr.mxu0 0.0
      %619 = vmatpush1.msra.mxu0 0.0
      %620 = vmatprep.subr.mxu0 0.0
      %621 = vmatpush1.msra.mxu0 0.0
      %622 = vmatprep.subr.mxu0 0.0
      %623 = vmatpush1.msra.mxu0 0.0
      %624 = vmatprep.subr.mxu0 0.0
      %625 = vmatpush1.msra.mxu0 0.0
      %626 = vmatprep.subr.mxu0 0.0
      %627 = vmatpush1.msra.mxu0 0.0
      %628 = vmatprep.subr.mxu0 0.0
      %629 = vmatpush1.msra.mxu0 0.0
      %630 = vmatprep.subr.mxu0 0.0
      %631 = vmatpush1.msra.mxu0 0.0
      %632 = vmatprep.subr.mxu0 0.0
      %633 = vmatpush1.msra.mxu0 0.0
      %634 = vmatprep.subr.mxu0 0.0
      %635 = vmatpush1.msra.mxu0 0.0
      %636 = vmatprep.subr.mxu0 0.0
      %637 = vmatpush1.msra.mxu0 0.0
      %638 = vmatprep.subr.mxu0 0.0
      %639 = vmatpush1.msra.mxu0 0.0
      %640 = vmatprep.subr.mxu0 0.0
      %641 = vmatpush1.msra.mxu0 0.0
      %642 = vmatprep.subr.mxu0 0.0
      %643 = vmatpush1.msra.mxu0 0.0
      %644 = vmatprep.subr.mxu0 0.0
      %645 = vmatpush1.msra.mxu0 0.0
      %646 = vmatprep.subr.mxu0 0.0
      %647 = vmatpush1.msra.mxu0 0.0
      %648 = vmatprep.subr.mxu0 0.0
      %649 = vmatpush1.msra.mxu0 0.0
      %650 = vmatprep.subr.mxu0 0.0
      %651 = vmatpush1.msra.mxu0 0.0
      %652 = vmatprep.subr.mxu0 0.0
      %653 = vmatpush1.msra.mxu0 0.0
      %654 = vmatprep.subr.mxu0 0.0
      %655 = vmatpush1.msra.mxu0 0.0
      %656 = vmatprep.subr.mxu0 0.0
      %657 = vmatpush1.msra.mxu0 0.0
      %658 = vmatprep.subr.mxu0 0.0
      %659 = vmatpush1.msra.mxu0 0.0
      %660 = vmatprep.subr.mxu0 0.0
      %661 = vmatpush1.msra.mxu0 0.0
      %662 = vmatprep.subr.mxu0 0.0
      %663 = vmatpush1.msra.mxu0 0.0
      %664 = vmatprep.subr.mxu0 0.0
      %665 = vmatpush1.msra.mxu0 0.0
      %666 = vmatprep.subr.mxu0 0.0
      %667 = vmatpush1.msra.mxu0 0.0
      %668 = vmatprep.subr.mxu0 0.0
      %669 = vmatpush1.msra.mxu0 0.0
      %670 = vmatprep.subr.mxu0 0.0
      %671 = vmatpush1.msra.mxu0 0.0
      %672 = vmatprep.subr.mxu0 0.0
      %673 = vmatpush1.msra.mxu0 0.0
      %674 = vmatprep.subr.mxu0 0.0
      %675 = vmatpush1.msra.mxu0 0.0
      %676 = vmatprep.mubr.f32.mxu0 0.0
      %677 = vmatmul.mubr.f32.gmra.mrb[0].mxu0 %v606
      %v678 = vpop.f32.mrb[0].mxu0
      %v679 = vadd.f32 0.0, %v678
      %v680 = vpop.f32.mrb[0].mxu0
      %v681 = vadd.f32 0.0, %v680
      %682 = vdwg.mxu0
      %v683 = vadd.f32 %v578, %v679
      %v684 = vadd.f32 %v579, %v681
      %v685 = vld [vmem:[#allocation2 + $0x4] sm:$0xff]
      %s686 = scalar_lea.vmem %s2, 16
      %v687 = vld [vmem:[%s686] sm:$0xf]
      %v689 = vcombine.high %v685, %v685
      %v691 = vsel %vm293, %v687, 0
      %v693 = vsel %vm297, %v685, 0
      %v695 = vsel %vm297, %v689, 0
      %697 = vmatprep.subr.mxu0 %v695
      %698 = vmatpush1.msra.mxu0 %v693
      %699 = vmatprep.subr.mxu0 0.0
      %700 = vmatpush1.msra.mxu0 0.0
      %701 = vmatprep.subr.mxu0 0.0
      %702 = vmatpush1.msra.mxu0 0.0
      %703 = vmatprep.subr.mxu0 0.0
      %704 = vmatpush1.msra.mxu0 0.0
      %705 = vmatprep.subr.mxu0 0.0
      %706 = vmatpush1.msra.mxu0 0.0
      %707 = vmatprep.subr.mxu0 0.0
      %708 = vmatpush1.msra.mxu0 0.0
      %709 = vmatprep.subr.mxu0 0.0
      %710 = vmatpush1.msra.mxu0 0.0
      %711 = vmatprep.subr.mxu0 0.0
      %712 = vmatpush1.msra.mxu0 0.0
      %713 = vmatprep.subr.mxu0 0.0
      %714 = vmatpush1.msra.mxu0 0.0
      %715 = vmatprep.subr.mxu0 0.0
      %716 = vmatpush1.msra.mxu0 0.0
      %717 = vmatprep.subr.mxu0 0.0
      %718 = vmatpush1.msra.mxu0 0.0
      %719 = vmatprep.subr.mxu0 0.0
      %720 = vmatpush1.msra.mxu0 0.0
      %721 = vmatprep.subr.mxu0 0.0
      %722 = vmatpush1.msra.mxu0 0.0
      %723 = vmatprep.subr.mxu0 0.0
      %724 = vmatpush1.msra.mxu0 0.0
      %725 = vmatprep.subr.mxu0 0.0
      %726 = vmatpush1.msra.mxu0 0.0
      %727 = vmatprep.subr.mxu0 0.0
      %728 = vmatpush1.msra.mxu0 0.0
      %729 = vmatprep.subr.mxu0 0.0
      %730 = vmatpush1.msra.mxu0 0.0
      %731 = vmatprep.subr.mxu0 0.0
      %732 = vmatpush1.msra.mxu0 0.0
      %733 = vmatprep.subr.mxu0 0.0
      %734 = vmatpush1.msra.mxu0 0.0
      %735 = vmatprep.subr.mxu0 0.0
      %736 = vmatpush1.msra.mxu0 0.0
      %737 = vmatprep.subr.mxu0 0.0
      %738 = vmatpush1.msra.mxu0 0.0
      %739 = vmatprep.subr.mxu0 0.0
      %740 = vmatpush1.msra.mxu0 0.0
      %741 = vmatprep.subr.mxu0 0.0
      %742 = vmatpush1.msra.mxu0 0.0
      %743 = vmatprep.subr.mxu0 0.0
      %744 = vmatpush1.msra.mxu0 0.0
      %745 = vmatprep.subr.mxu0 0.0
      %746 = vmatpush1.msra.mxu0 0.0
      %747 = vmatprep.subr.mxu0 0.0
      %748 = vmatpush1.msra.mxu0 0.0
      %749 = vmatprep.subr.mxu0 0.0
      %750 = vmatpush1.msra.mxu0 0.0
      %751 = vmatprep.subr.mxu0 0.0
      %752 = vmatpush1.msra.mxu0 0.0
      %753 = vmatprep.subr.mxu0 0.0
      %754 = vmatpush1.msra.mxu0 0.0
      %755 = vmatprep.subr.mxu0 0.0
      %756 = vmatpush1.msra.mxu0 0.0
      %757 = vmatprep.subr.mxu0 0.0
      %758 = vmatpush1.msra.mxu0 0.0
      %759 = vmatprep.subr.mxu0 0.0
      %760 = vmatpush1.msra.mxu0 0.0
      %761 = vmatprep.mubr.f32.mxu0 0.0
      %762 = vmatmul.mubr.f32.gmra.mrb[0].mxu0 %v691
      %v763 = vpop.f32.mrb[0].mxu0
      %v764 = vadd.f32 0.0, %v763
      %v765 = vpop.f32.mrb[0].mxu0
      %v766 = vadd.f32 0.0, %v765
      %767 = vdwg.mxu0
      %v768 = vadd.f32 %v683, %v764
      %v769 = vadd.f32 %v684, %v766
      %v770 = vld [vmem:[#allocation2 + $0x4] sm:$0xff]
      %v771 = vld [vmem:[#allocation2 + $0xc] sm:$0xf]
      %772 = vrot.lane.b32.xlu0 %v476, 1
      %v773 = vpop.permute.xlu0 %772
      %v774 = vrot.slane %v773, 4
      %v775 = vsel %vm602, %v774, %v773
      %v778 = vmul.f32 %v770, %v775
      %v779 = vmul.f32 %v771, %v774
      %s780 = scalar_lea.vmem %s2, 20
      %v781 = vld [vmem:[%s780] sm:$0xf]
      %v784 = vcombine.high %v778, %v778
      %785 = vrot.lane.b32.xlu0 %v778, 127
      %v786 = vpop.permute.xlu0 %785
      %787 = vrot.lane.b32.xlu0 %v784, 127
      %v788 = vpop.permute.xlu0 %787
      %789 = vrot.lane.b32.xlu0 %v779, 127
      %v790 = vpop.permute.xlu0 %789
      %v791 = vsel %vm585, %v786, %v788
      %v792 = vsel %vm585, %v788, %v790
      %v794 = vsel %vm293, %v781, 0
      %v796 = vsel %vm297, %v791, 0
      %v798 = vsel %vm297, %v792, 0
      %800 = vmatprep.subr.mxu0 %v798
      %801 = vmatpush1.msra.mxu0 %v796
      %802 = vmatprep.subr.mxu0 0.0
      %803 = vmatpush1.msra.mxu0 0.0
      %804 = vmatprep.subr.mxu0 0.0
      %805 = vmatpush1.msra.mxu0 0.0
      %806 = vmatprep.subr.mxu0 0.0
      %807 = vmatpush1.msra.mxu0 0.0
      %808 = vmatprep.subr.mxu0 0.0
      %809 = vmatpush1.msra.mxu0 0.0
      %810 = vmatprep.subr.mxu0 0.0
      %811 = vmatpush1.msra.mxu0 0.0
      %812 = vmatprep.subr.mxu0 0.0
      %813 = vmatpush1.msra.mxu0 0.0
      %814 = vmatprep.subr.mxu0 0.0
      %815 = vmatpush1.msra.mxu0 0.0
      %816 = vmatprep.subr.mxu0 0.0
      %817 = vmatpush1.msra.mxu0 0.0
      %818 = vmatprep.subr.mxu0 0.0
      %819 = vmatpush1.msra.mxu0 0.0
      %820 = vmatprep.subr.mxu0 0.0
      %821 = vmatpush1.msra.mxu0 0.0
      %822 = vmatprep.subr.mxu0 0.0
      %823 = vmatpush1.msra.mxu0 0.0
      %824 = vmatprep.subr.mxu0 0.0
      %825 = vmatpush1.msra.mxu0 0.0
      %826 = vmatprep.subr.mxu0 0.0
      %827 = vmatpush1.msra.mxu0 0.0
      %828 = vmatprep.subr.mxu0 0.0
      %829 = vmatpush1.msra.mxu0 0.0
      %830 = vmatprep.subr.mxu0 0.0
      %831 = vmatpush1.msra.mxu0 0.0
      %832 = vmatprep.subr.mxu0 0.0
      %833 = vmatpush1.msra.mxu0 0.0
      %834 = vmatprep.subr.mxu0 0.0
      %835 = vmatpush1.msra.mxu0 0.0
      %836 = vmatprep.subr.mxu0 0.0
      %837 = vmatpush1.msra.mxu0 0.0
      %838 = vmatprep.subr.mxu0 0.0
      %839 = vmatpush1.msra.mxu0 0.0
      %840 = vmatprep.subr.mxu0 0.0
      %841 = vmatpush1.msra.mxu0 0.0
      %842 = vmatprep.subr.mxu0 0.0
      %843 = vmatpush1.msra.mxu0 0.0
      %844 = vmatprep.subr.mxu0 0.0
      %845 = vmatpush1.msra.mxu0 0.0
      %846 = vmatprep.subr.mxu0 0.0
      %847 = vmatpush1.msra.mxu0 0.0
      %848 = vmatprep.subr.mxu0 0.0
      %849 = vmatpush1.msra.mxu0 0.0
      %850 = vmatprep.subr.mxu0 0.0
      %851 = vmatpush1.msra.mxu0 0.0
      %852 = vmatprep.subr.mxu0 0.0
      %853 = vmatpush1.msra.mxu0 0.0
      %854 = vmatprep.subr.mxu0 0.0
      %855 = vmatpush1.msra.mxu0 0.0
      %856 = vmatprep.subr.mxu0 0.0
      %857 = vmatpush1.msra.mxu0 0.0
      %858 = vmatprep.subr.mxu0 0.0
      %859 = vmatpush1.msra.mxu0 0.0
      %860 = vmatprep.subr.mxu0 0.0
      %861 = vmatpush1.msra.mxu0 0.0
      %862 = vmatprep.subr.mxu0 0.0
      %863 = vmatpush1.msra.mxu0 0.0
      %864 = vmatprep.mubr.f32.mxu0 0.0
      %865 = vmatmul.mubr.f32.gmra.mrb[0].mxu0 %v794
      %v866 = vpop.f32.mrb[0].mxu0
      %v867 = vadd.f32 0.0, %v866
      %v868 = vpop.f32.mrb[0].mxu0
      %v869 = vadd.f32 0.0, %v868
      %870 = vdwg.mxu0
      %v871 = vadd.f32 %v768, %v867
      %v872 = vadd.f32 %v769, %v869
      %v873 = vld [vmem:[#allocation2 + $0x4] sm:$0xff]
      %v874 = vld [vmem:[#allocation2 + $0xc] sm:$0xf]
      %875 = vrot.lane.b32.xlu0 %v268, 15
      %v876 = vpop.permute.xlu0 %875
      %v877 = vrot.slane %v876, 4
      %v878 = vsel %vm497, %v877, %v876
      %v881 = vmul.f32 %v873, %v878
      %v882 = vmul.f32 %v874, %v877
      %s883 = scalar_lea.vmem %s2, 24
      %v884 = vld [vmem:[%s883] sm:$0xf]
      %v887 = vcombine.high %v881, %v881
      %888 = vrot.lane.b32.xlu0 %v881, 113
      %v889 = vpop.permute.xlu0 %888
      %890 = vrot.lane.b32.xlu0 %v887, 113
      %v891 = vpop.permute.xlu0 %890
      %892 = vrot.lane.b32.xlu0 %v882, 113
      %v893 = vpop.permute.xlu0 %892
      %v894 = vsel %vm480, %v889, %v891
      %v895 = vsel %vm480, %v891, %v893
      %v897 = vsel %vm293, %v884, 0
      %v899 = vsel %vm297, %v894, 0
      %v901 = vsel %vm297, %v895, 0
      %903 = vmatprep.subr.mxu0 %v901
      %904 = vmatpush1.msra.mxu0 %v899
      %905 = vmatprep.subr.mxu0 0.0
      %906 = vmatpush1.msra.mxu0 0.0
      %907 = vmatprep.subr.mxu0 0.0
      %908 = vmatpush1.msra.mxu0 0.0
      %909 = vmatprep.subr.mxu0 0.0
      %910 = vmatpush1.msra.mxu0 0.0
      %911 = vmatprep.subr.mxu0 0.0
      %912 = vmatpush1.msra.mxu0 0.0
      %913 = vmatprep.subr.mxu0 0.0
      %914 = vmatpush1.msra.mxu0 0.0
      %915 = vmatprep.subr.mxu0 0.0
      %916 = vmatpush1.msra.mxu0 0.0
      %917 = vmatprep.subr.mxu0 0.0
      %918 = vmatpush1.msra.mxu0 0.0
      %919 = vmatprep.subr.mxu0 0.0
      %920 = vmatpush1.msra.mxu0 0.0
      %921 = vmatprep.subr.mxu0 0.0
      %922 = vmatpush1.msra.mxu0 0.0
      %923 = vmatprep.subr.mxu0 0.0
      %924 = vmatpush1.msra.mxu0 0.0
      %925 = vmatprep.subr.mxu0 0.0
      %926 = vmatpush1.msra.mxu0 0.0
      %927 = vmatprep.subr.mxu0 0.0
      %928 = vmatpush1.msra.mxu0 0.0
      %929 = vmatprep.subr.mxu0 0.0
      %930 = vmatpush1.msra.mxu0 0.0
      %931 = vmatprep.subr.mxu0 0.0
      %932 = vmatpush1.msra.mxu0 0.0
      %933 = vmatprep.subr.mxu0 0.0
      %934 = vmatpush1.msra.mxu0 0.0
      %935 = vmatprep.subr.mxu0 0.0
      %936 = vmatpush1.msra.mxu0 0.0
      %937 = vmatprep.subr.mxu0 0.0
      %938 = vmatpush1.msra.mxu0 0.0
      %939 = vmatprep.subr.mxu0 0.0
      %940 = vmatpush1.msra.mxu0 0.0
      %941 = vmatprep.subr.mxu0 0.0
      %942 = vmatpush1.msra.mxu0 0.0
      %943 = vmatprep.subr.mxu0 0.0
      %944 = vmatpush1.msra.mxu0 0.0
      %945 = vmatprep.subr.mxu0 0.0
      %946 = vmatpush1.msra.mxu0 0.0
      %947 = vmatprep.subr.mxu0 0.0
      %948 = vmatpush1.msra.mxu0 0.0
      %949 = vmatprep.subr.mxu0 0.0
      %950 = vmatpush1.msra.mxu0 0.0
      %951 = vmatprep.subr.mxu0 0.0
      %952 = vmatpush1.msra.mxu0 0.0
      %953 = vmatprep.subr.mxu0 0.0
      %954 = vmatpush1.msra.mxu0 0.0
      %955 = vmatprep.subr.mxu0 0.0
      %956 = vmatpush1.msra.mxu0 0.0
      %957 = vmatprep.subr.mxu0 0.0
      %958 = vmatpush1.msra.mxu0 0.0
      %959 = vmatprep.subr.mxu0 0.0
      %960 = vmatpush1.msra.mxu0 0.0
      %961 = vmatprep.subr.mxu0 0.0
      %962 = vmatpush1.msra.mxu0 0.0
      %963 = vmatprep.subr.mxu0 0.0
      %964 = vmatpush1.msra.mxu0 0.0
      %965 = vmatprep.subr.mxu0 0.0
      %966 = vmatpush1.msra.mxu0 0.0
      %967 = vmatprep.mubr.f32.mxu0 0.0
      %968 = vmatmul.mubr.f32.gmra.mrb[0].mxu0 %v897
      %v969 = vpop.f32.mrb[0].mxu0
      %v970 = vadd.f32 0.0, %v969
      %v971 = vpop.f32.mrb[0].mxu0
      %v972 = vadd.f32 0.0, %v971
      %973 = vdwg.mxu0
      %v974 = vadd.f32 %v871, %v970
      %v975 = vadd.f32 %v872, %v972
      %v976 = vld [vmem:[#allocation2 + $0x4] sm:$0xff]
      %v977 = vld [vmem:[#allocation2 + $0xc] sm:$0xf]
      %s978 = scalar_lea.vmem %s2, 28
      %v979 = vld [vmem:[%s978] sm:$0xf]
      %v982 = vcombine.high %v976, %v976
      %983 = vrot.lane.b32.xlu0 %v976, 112
      %v984 = vpop.permute.xlu0 %983
      %985 = vrot.lane.b32.xlu0 %v982, 112
      %v986 = vpop.permute.xlu0 %985
      %987 = vrot.lane.b32.xlu0 %v977, 112
      %v988 = vpop.permute.xlu0 %987
      %vm989 = vcmask 916480
      %v990 = vsel %vm989, %v984, %v986
      %v991 = vsel %vm989, %v986, %v988
      %v993 = vsel %vm293, %v979, 0
      %v995 = vsel %vm297, %v990, 0
      %v997 = vsel %vm297, %v991, 0
      %999 = vmatprep.subr.mxu0 %v997
      %1000 = vmatpush1.msra.mxu0 %v995
      %1001 = vmatprep.subr.mxu0 0.0
      %1002 = vmatpush1.msra.mxu0 0.0
      %1003 = vmatprep.subr.mxu0 0.0
      %1004 = vmatpush1.msra.mxu0 0.0
      %1005 = vmatprep.subr.mxu0 0.0
      %1006 = vmatpush1.msra.mxu0 0.0
      %1007 = vmatprep.subr.mxu0 0.0
      %1008 = vmatpush1.msra.mxu0 0.0
      %1009 = vmatprep.subr.mxu0 0.0
      %1010 = vmatpush1.msra.mxu0 0.0
      %1011 = vmatprep.subr.mxu0 0.0
      %1012 = vmatpush1.msra.mxu0 0.0
      %1013 = vmatprep.subr.mxu0 0.0
      %1014 = vmatpush1.msra.mxu0 0.0
      %1015 = vmatprep.subr.mxu0 0.0
      %1016 = vmatpush1.msra.mxu0 0.0
      %1017 = vmatprep.subr.mxu0 0.0
      %1018 = vmatpush1.msra.mxu0 0.0
      %1019 = vmatprep.subr.mxu0 0.0
      %1020 = vmatpush1.msra.mxu0 0.0
      %1021 = vmatprep.subr.mxu0 0.0
      %1022 = vmatpush1.msra.mxu0 0.0
      %1023 = vmatprep.subr.mxu0 0.0
      %1024 = vmatpush1.msra.mxu0 0.0
      %1025 = vmatprep.subr.mxu0 0.0
      %1026 = vmatpush1.msra.mxu0 0.0
      %1027 = vmatprep.subr.mxu0 0.0
      %1028 = vmatpush1.msra.mxu0 0.0
      %1029 = vmatprep.subr.mxu0 0.0
      %1030 = vmatpush1.msra.mxu0 0.0
      %1031 = vmatprep.subr.mxu0 0.0
      %1032 = vmatpush1.msra.mxu0 0.0
      %1033 = vmatprep.subr.mxu0 0.0
      %1034 = vmatpush1.msra.mxu0 0.0
      %1035 = vmatprep.subr.mxu0 0.0
      %1036 = vmatpush1.msra.mxu0 0.0
      %1037 = vmatprep.subr.mxu0 0.0
      %1038 = vmatpush1.msra.mxu0 0.0
      %1039 = vmatprep.subr.mxu0 0.0
      %1040 = vmatpush1.msra.mxu0 0.0
      %1041 = vmatprep.subr.mxu0 0.0
      %1042 = vmatpush1.msra.mxu0 0.0
      %1043 = vmatprep.subr.mxu0 0.0
      %1044 = vmatpush1.msra.mxu0 0.0
      %1045 = vmatprep.subr.mxu0 0.0
      %1046 = vmatpush1.msra.mxu0 0.0
      %1047 = vmatprep.subr.mxu0 0.0
      %1048 = vmatpush1.msra.mxu0 0.0
      %1049 = vmatprep.subr.mxu0 0.0
      %1050 = vmatpush1.msra.mxu0 0.0
      %1051 = vmatprep.subr.mxu0 0.0
      %1052 = vmatpush1.msra.mxu0 0.0
      %1053 = vmatprep.subr.mxu0 0.0
      %1054 = vmatpush1.msra.mxu0 0.0
      %1055 = vmatprep.subr.mxu0 0.0
      %1056 = vmatpush1.msra.mxu0 0.0
      %1057 = vmatprep.subr.mxu0 0.0
      %1058 = vmatpush1.msra.mxu0 0.0
      %1059 = vmatprep.subr.mxu0 0.0
      %1060 = vmatpush1.msra.mxu0 0.0
      %1061 = vmatprep.subr.mxu0 0.0
      %1062 = vmatpush1.msra.mxu0 0.0
      %1063 = vmatprep.mubr.f32.mxu0 0.0
      %1064 = vmatmul.mubr.f32.gmra.mrb[0].mxu0 %v993
      %v1065 = vpop.f32.mrb[0].mxu0
      %v1066 = vadd.f32 0.0, %v1065
      %v1067 = vpop.f32.mrb[0].mxu0
      %v1068 = vadd.f32 0.0, %v1067
      %1069 = vdwg.mxu0
      %v1070 = vadd.f32 %v974, %v1066
      %v1071 = vadd.f32 %v975, %v1068
      %v1072 = vld [vmem:[#allocation2 + $0x4] sm:$0xff]
      %v1073 = vld [vmem:[#allocation2 + $0xc] sm:$0xf]
      %1074 = vrot.lane.b32.xlu0 %v476, 17
      %v1075 = vpop.permute.xlu0 %1074
      %v1076 = vrot.slane %v1075, 4
      %v1077 = vsel %vm382, %v1076, %v1075
      %v1080 = vmul.f32 %v1072, %v1077
      %v1081 = vmul.f32 %v1073, %v1076
      %s1082 = scalar_lea.vmem %s2, 32
      %v1083 = vld [vmem:[%s1082] sm:$0xf]
      %v1086 = vcombine.high %v1080, %v1080
      %1087 = vrot.lane.b32.xlu0 %v1080, 111
      %v1088 = vpop.permute.xlu0 %1087
      %1089 = vrot.lane.b32.xlu0 %v1086, 111
      %v1090 = vpop.permute.xlu0 %1089
      %1091 = vrot.lane.b32.xlu0 %v1081, 111
      %v1092 = vpop.permute.xlu0 %1091
      %v1093 = vsel %vm272, %v1088, %v1090
      %v1094 = vsel %vm272, %v1090, %v1092
      %v1096 = vsel %vm293, %v1083, 0
      %v1098 = vsel %vm297, %v1093, 0
      %v1100 = vsel %vm297, %v1094, 0
      %1102 = vmatprep.subr.mxu0 %v1100
      %1103 = vmatpush1.msra.mxu0 %v1098
      %1104 = vmatprep.subr.mxu0 0.0
      %1105 = vmatpush1.msra.mxu0 0.0
      %1106 = vmatprep.subr.mxu0 0.0
      %1107 = vmatpush1.msra.mxu0 0.0
      %1108 = vmatprep.subr.mxu0 0.0
      %1109 = vmatpush1.msra.mxu0 0.0
      %1110 = vmatprep.subr.mxu0 0.0
      %1111 = vmatpush1.msra.mxu0 0.0
      %1112 = vmatprep.subr.mxu0 0.0
      %1113 = vmatpush1.msra.mxu0 0.0
      %1114 = vmatprep.subr.mxu0 0.0
      %1115 = vmatpush1.msra.mxu0 0.0
      %1116 = vmatprep.subr.mxu0 0.0
      %1117 = vmatpush1.msra.mxu0 0.0
      %1118 = vmatprep.subr.mxu0 0.0
      %1119 = vmatpush1.msra.mxu0 0.0
      %1120 = vmatprep.subr.mxu0 0.0
      %1121 = vmatpush1.msra.mxu0 0.0
      %1122 = vmatprep.subr.mxu0 0.0
      %1123 = vmatpush1.msra.mxu0 0.0
      %1124 = vmatprep.subr.mxu0 0.0
      %1125 = vmatpush1.msra.mxu0 0.0
      %1126 = vmatprep.subr.mxu0 0.0
      %1127 = vmatpush1.msra.mxu0 0.0
      %1128 = vmatprep.subr.mxu0 0.0
      %1129 = vmatpush1.msra.mxu0 0.0
      %1130 = vmatprep.subr.mxu0 0.0
      %1131 = vmatpush1.msra.mxu0 0.0
      %1132 = vmatprep.subr.mxu0 0.0
      %1133 = vmatpush1.msra.mxu0 0.0
      %1134 = vmatprep.subr.mxu0 0.0
      %1135 = vmatpush1.msra.mxu0 0.0
      %1136 = vmatprep.subr.mxu0 0.0
      %1137 = vmatpush1.msra.mxu0 0.0
      %1138 = vmatprep.subr.mxu0 0.0
      %1139 = vmatpush1.msra.mxu0 0.0
      %1140 = vmatprep.subr.mxu0 0.0
      %1141 = vmatpush1.msra.mxu0 0.0
      %1142 = vmatprep.subr.mxu0 0.0
      %1143 = vmatpush1.msra.mxu0 0.0
      %1144 = vmatprep.subr.mxu0 0.0
      %1145 = vmatpush1.msra.mxu0 0.0
      %1146 = vmatprep.subr.mxu0 0.0
      %1147 = vmatpush1.msra.mxu0 0.0
      %1148 = vmatprep.subr.mxu0 0.0
      %1149 = vmatpush1.msra.mxu0 0.0
      %1150 = vmatprep.subr.mxu0 0.0
      %1151 = vmatpush1.msra.mxu0 0.0
      %1152 = vmatprep.subr.mxu0 0.0
      %1153 = vmatpush1.msra.mxu0 0.0
      %1154 = vmatprep.subr.mxu0 0.0
      %1155 = vmatpush1.msra.mxu0 0.0
      %1156 = vmatprep.subr.mxu0 0.0
      %1157 = vmatpush1.msra.mxu0 0.0
      %1158 = vmatprep.subr.mxu0 0.0
      %1159 = vmatpush1.msra.mxu0 0.0
      %1160 = vmatprep.subr.mxu0 0.0
      %1161 = vmatpush1.msra.mxu0 0.0
      %1162 = vmatprep.subr.mxu0 0.0
      %1163 = vmatpush1.msra.mxu0 0.0
      %1164 = vmatprep.subr.mxu0 0.0
      %1165 = vmatpush1.msra.mxu0 0.0
      %1166 = vmatprep.mubr.f32.mxu0 0.0
      %1167 = vmatmul.mubr.f32.gmra.mrb[0].mxu0 %v1096
      %v1168 = vpop.f32.mrb[0].mxu0
      %v1169 = vadd.f32 0.0, %v1168
      %v1170 = vpop.f32.mrb[0].mxu0
      %v1171 = vadd.f32 0.0, %v1170
      %1172 = vdwg.mxu0
      %v1173 = vadd.f32 %v1070, %v1169
      %v1174 = vadd.f32 %v1071, %v1171
      %v1175 = vld [vmem:[%s3] sm:$0xf]
      %1177 = vset.pattern.permute.xlu0 0
      %1178 = vperm.xlu0 %1177, %v1175
      %v1179 = vpop.permute.xlu0 %1178
      %v1181 = vadd.f32 %v1173, %v1179
      %v1182 = vadd.f32 %v1174, %v1179
      %v1183 = vmax.f32 %v1181, 0.0
      %v1184 = vmax.f32 %v1182, 0.0
      %1185 = vst [vmem:[#allocation3] sm:$0xf] 0.0
      %1186 = vst [vmem:[#allocation3 + $0xc] sm:$0xf] 0.0
      %v1189 = vcombine.low %v1183, %v1184
      %1191 = vst [vmem:[#allocation3 + $0x4] sm:$0xff] %v1189
      %v1192 = vld [vmem:[#allocation3] sm:$0xff]
      %v1193 = vld [vmem:[#allocation3 + $0x8] sm:$0xf]
      %v1194 = vld [vmem:[%s1] sm:$0x3]
      %v1196 = vlaneseq
      %v1197 = vshrl.u32 %v1196, 7
      %v1198 = vsub.s32 0, %v1197
      %v1199 = vrot.slane %v1194, %v1198
      %v1200 = vlaneseq
      %v1201 = vshrl.u32 %v1200, 7
      %v1202 = vsub.s32 1, %v1201
      %v1203 = vrot.slane %v1194, %v1202
      %v1204 = vcombine.low %v1199, %v1203
      %1205 = vrot.lane.b32.xlu0 %v1204, 111
      %v1206 = vpop.permute.xlu0 %1205
      %v1207 = vrot.slane %v1206, 4
      %v1208 = vsel %vm272, %v1207, %v1206
      %v1211 = vmul.f32 %v1192, %v1208
      %v1212 = vmul.f32 %v1193, %v1207
      %v1213 = vld [vmem:[%s4] sm:$0xf]
      %s1214 = scalar_lea.vmem %s4, 4
      %v1215 = vld [vmem:[%s1214] sm:$0xf]
      %v1218 = vcombine.high %v1192, %v1192
      %1219 = vrot.lane.b32.xlu0 %v1192, 16
      %v1220 = vpop.permute.xlu0 %1219
      %1221 = vrot.lane.b32.xlu0 %v1218, 16
      %v1222 = vpop.permute.xlu0 %1221
      %1223 = vrot.lane.b32.xlu0 %v1193, 16
      %v1224 = vpop.permute.xlu0 %1223
      %v1225 = vsel %vm290, %v1220, %v1222
      %v1226 = vsel %vm290, %v1222, %v1224
      %v1228 = vsel %vm293, %v1215, 0
      %v1230 = vsel %vm297, %v1225, 0
      %v1232 = vsel %vm297, %v1226, 0
      %1234 = vmatprep.subr.mxu0 %v1232
      %1235 = vmatpush1.msra.mxu0 %v1230
      %1236 = vmatprep.subr.mxu0 0.0
      %1237 = vmatpush1.msra.mxu0 0.0
      %1238 = vmatprep.subr.mxu0 0.0
      %1239 = vmatpush1.msra.mxu0 0.0
      %1240 = vmatprep.subr.mxu0 0.0
      %1241 = vmatpush1.msra.mxu0 0.0
      %1242 = vmatprep.subr.mxu0 0.0
      %1243 = vmatpush1.msra.mxu0 0.0
      %1244 = vmatprep.subr.mxu0 0.0
      %1245 = vmatpush1.msra.mxu0 0.0
      %1246 = vmatprep.subr.mxu0 0.0
      %1247 = vmatpush1.msra.mxu0 0.0
      %1248 = vmatprep.subr.mxu0 0.0
      %1249 = vmatpush1.msra.mxu0 0.0
      %1250 = vmatprep.subr.mxu0 0.0
      %1251 = vmatpush1.msra.mxu0 0.0
      %1252 = vmatprep.subr.mxu0 0.0
      %1253 = vmatpush1.msra.mxu0 0.0
      %1254 = vmatprep.subr.mxu0 0.0
      %1255 = vmatpush1.msra.mxu0 0.0
      %1256 = vmatprep.subr.mxu0 0.0
      %1257 = vmatpush1.msra.mxu0 0.0
      %1258 = vmatprep.subr.mxu0 0.0
      %1259 = vmatpush1.msra.mxu0 0.0
      %1260 = vmatprep.subr.mxu0 0.0
      %1261 = vmatpush1.msra.mxu0 0.0
      %1262 = vmatprep.subr.mxu0 0.0
      %1263 = vmatpush1.msra.mxu0 0.0
      %1264 = vmatprep.subr.mxu0 0.0
      %1265 = vmatpush1.msra.mxu0 0.0
      %1266 = vmatprep.subr.mxu0 0.0
      %1267 = vmatpush1.msra.mxu0 0.0
      %1268 = vmatprep.subr.mxu0 0.0
      %1269 = vmatpush1.msra.mxu0 0.0
      %1270 = vmatprep.subr.mxu0 0.0
      %1271 = vmatpush1.msra.mxu0 0.0
      %1272 = vmatprep.subr.mxu0 0.0
      %1273 = vmatpush1.msra.mxu0 0.0
      %1274 = vmatprep.subr.mxu0 0.0
      %1275 = vmatpush1.msra.mxu0 0.0
      %1276 = vmatprep.subr.mxu0 0.0
      %1277 = vmatpush1.msra.mxu0 0.0
      %1278 = vmatprep.subr.mxu0 0.0
      %1279 = vmatpush1.msra.mxu0 0.0
      %1280 = vmatprep.subr.mxu0 0.0
      %1281 = vmatpush1.msra.mxu0 0.0
      %1282 = vmatprep.subr.mxu0 0.0
      %1283 = vmatpush1.msra.mxu0 0.0
      %1284 = vmatprep.subr.mxu0 0.0
      %1285 = vmatpush1.msra.mxu0 0.0
      %1286 = vmatprep.subr.mxu0 0.0
      %1287 = vmatpush1.msra.mxu0 0.0
      %1288 = vmatprep.subr.mxu0 0.0
      %1289 = vmatpush1.msra.mxu0 0.0
      %1290 = vmatprep.subr.mxu0 0.0
      %1291 = vmatpush1.msra.mxu0 0.0
      %1292 = vmatprep.subr.mxu0 0.0
      %1293 = vmatpush1.msra.mxu0 0.0
      %1294 = vmatprep.subr.mxu0 0.0
      %1295 = vmatpush1.msra.mxu0 0.0
      %1296 = vmatprep.subr.mxu0 0.0
      %1297 = vmatpush1.msra.mxu0 0.0
      %1298 = vmatprep.mubr.f32.mxu0 0.0
      %1299 = vmatmul.mubr.f32.gmra.mrb[0].mxu0 %v1228
      %v1300 = vpop.f32.mrb[0].mxu0
      %v1301 = vadd.f32 0.0, %v1300
      %v1302 = vpop.f32.mrb[0].mxu0
      %v1303 = vadd.f32 0.0, %v1302
      %1304 = vdwg.mxu0
      %v1307 = vcombine.high %v1211, %v1211
      %1308 = vrot.lane.b32.xlu0 %v1211, 17
      %v1309 = vpop.permute.xlu0 %1308
      %1310 = vrot.lane.b32.xlu0 %v1307, 17
      %v1311 = vpop.permute.xlu0 %1310
      %1312 = vrot.lane.b32.xlu0 %v1212, 17
      %v1313 = vpop.permute.xlu0 %1312
      %v1314 = vsel %vm382, %v1309, %v1311
      %v1315 = vsel %vm382, %v1311, %v1313
      %v1317 = vsel %vm293, %v1213, 0
      %v1319 = vsel %vm297, %v1314, 0
      %v1321 = vsel %vm297, %v1315, 0
      %1323 = vmatprep.subr.mxu0 %v1321
      %1324 = vmatpush1.msra.mxu0 %v1319
      %1325 = vmatprep.subr.mxu0 0.0
      %1326 = vmatpush1.msra.mxu0 0.0
      %1327 = vmatprep.subr.mxu0 0.0
      %1328 = vmatpush1.msra.mxu0 0.0
      %1329 = vmatprep.subr.mxu0 0.0
      %1330 = vmatpush1.msra.mxu0 0.0
      %1331 = vmatprep.subr.mxu0 0.0
      %1332 = vmatpush1.msra.mxu0 0.0
      %1333 = vmatprep.subr.mxu0 0.0
      %1334 = vmatpush1.msra.mxu0 0.0
      %1335 = vmatprep.subr.mxu0 0.0
      %1336 = vmatpush1.msra.mxu0 0.0
      %1337 = vmatprep.subr.mxu0 0.0
      %1338 = vmatpush1.msra.mxu0 0.0
      %1339 = vmatprep.subr.mxu0 0.0
      %1340 = vmatpush1.msra.mxu0 0.0
      %1341 = vmatprep.subr.mxu0 0.0
      %1342 = vmatpush1.msra.mxu0 0.0
      %1343 = vmatprep.subr.mxu0 0.0
      %1344 = vmatpush1.msra.mxu0 0.0
      %1345 = vmatprep.subr.mxu0 0.0
      %1346 = vmatpush1.msra.mxu0 0.0
      %1347 = vmatprep.subr.mxu0 0.0
      %1348 = vmatpush1.msra.mxu0 0.0
      %1349 = vmatprep.subr.mxu0 0.0
      %1350 = vmatpush1.msra.mxu0 0.0
      %1351 = vmatprep.subr.mxu0 0.0
      %1352 = vmatpush1.msra.mxu0 0.0
      %1353 = vmatprep.subr.mxu0 0.0
      %1354 = vmatpush1.msra.mxu0 0.0
      %1355 = vmatprep.subr.mxu0 0.0
      %1356 = vmatpush1.msra.mxu0 0.0
      %1357 = vmatprep.subr.mxu0 0.0
      %1358 = vmatpush1.msra.mxu0 0.0
      %1359 = vmatprep.subr.mxu0 0.0
      %1360 = vmatpush1.msra.mxu0 0.0
      %1361 = vmatprep.subr.mxu0 0.0
      %1362 = vmatpush1.msra.mxu0 0.0
      %1363 = vmatprep.subr.mxu0 0.0
      %1364 = vmatpush1.msra.mxu0 0.0
      %1365 = vmatprep.subr.mxu0 0.0
      %1366 = vmatpush1.msra.mxu0 0.0
      %1367 = vmatprep.subr.mxu0 0.0
      %1368 = vmatpush1.msra.mxu0 0.0
      %1369 = vmatprep.subr.mxu0 0.0
      %1370 = vmatpush1.msra.mxu0 0.0
      %1371 = vmatprep.subr.mxu0 0.0
      %1372 = vmatpush1.msra.mxu0 0.0
      %1373 = vmatprep.subr.mxu0 0.0
      %1374 = vmatpush1.msra.mxu0 0.0
      %1375 = vmatprep.subr.mxu0 0.0
      %1376 = vmatpush1.msra.mxu0 0.0
      %1377 = vmatprep.subr.mxu0 0.0
      %1378 = vmatpush1.msra.mxu0 0.0
      %1379 = vmatprep.subr.mxu0 0.0
      %1380 = vmatpush1.msra.mxu0 0.0
      %1381 = vmatprep.subr.mxu0 0.0
      %1382 = vmatpush1.msra.mxu0 0.0
      %1383 = vmatprep.subr.mxu0 0.0
      %1384 = vmatpush1.msra.mxu0 0.0
      %1385 = vmatprep.subr.mxu0 0.0
      %1386 = vmatpush1.msra.mxu0 0.0
      %1387 = vmatprep.mubr.f32.mxu0 0.0
      %1388 = vmatmul.mubr.f32.gmra.mrb[0].mxu0 %v1317
      %v1389 = vpop.f32.mrb[0].mxu0
      %v1390 = vadd.f32 %v1301, %v1389
      %v1391 = vpop.f32.mrb[0].mxu0
      %v1392 = vadd.f32 %v1303, %v1391
      %1393 = vdwg.mxu0
      %v1394 = vld [vmem:[#allocation3] sm:$0xff]
      %v1395 = vld [vmem:[#allocation3 + $0x8] sm:$0xf]
      %v1396 = vld [vmem:[%s465] sm:$0x3]
      %v1398 = vlaneseq
      %v1399 = vshrl.u32 %v1398, 7
      %v1400 = vsub.s32 0, %v1399
      %v1401 = vrot.slane %v1396, %v1400
      %v1402 = vlaneseq
      %v1403 = vshrl.u32 %v1402, 7
      %v1404 = vsub.s32 1, %v1403
      %v1405 = vrot.slane %v1396, %v1404
      %v1406 = vcombine.low %v1401, %v1405
      %1407 = vrot.lane.b32.xlu0 %v1406, 113
      %v1408 = vpop.permute.xlu0 %1407
      %v1409 = vrot.slane %v1408, 4
      %v1410 = vsel %vm480, %v1409, %v1408
      %v1413 = vmul.f32 %v1394, %v1410
      %v1414 = vmul.f32 %v1395, %v1409
      %s1415 = scalar_lea.vmem %s4, 8
      %v1416 = vld [vmem:[%s1415] sm:$0xf]
      %v1419 = vcombine.high %v1413, %v1413
      %1420 = vrot.lane.b32.xlu0 %v1413, 15
      %v1421 = vpop.permute.xlu0 %1420
      %1422 = vrot.lane.b32.xlu0 %v1419, 15
      %v1423 = vpop.permute.xlu0 %1422
      %1424 = vrot.lane.b32.xlu0 %v1414, 15
      %v1425 = vpop.permute.xlu0 %1424
      %v1426 = vsel %vm497, %v1421, %v1423
      %v1427 = vsel %vm497, %v1423, %v1425
      %v1429 = vsel %vm293, %v1416, 0
      %v1431 = vsel %vm297, %v1426, 0
      %v1433 = vsel %vm297, %v1427, 0
      %1435 = vmatprep.subr.mxu0 %v1433
      %1436 = vmatpush1.msra.mxu0 %v1431
      %1437 = vmatprep.subr.mxu0 0.0
      %1438 = vmatpush1.msra.mxu0 0.0
      %1439 = vmatprep.subr.mxu0 0.0
      %1440 = vmatpush1.msra.mxu0 0.0
      %1441 = vmatprep.subr.mxu0 0.0
      %1442 = vmatpush1.msra.mxu0 0.0
      %1443 = vmatprep.subr.mxu0 0.0
      %1444 = vmatpush1.msra.mxu0 0.0
      %1445 = vmatprep.subr.mxu0 0.0
      %1446 = vmatpush1.msra.mxu0 0.0
      %1447 = vmatprep.subr.mxu0 0.0
      %1448 = vmatpush1.msra.mxu0 0.0
      %1449 = vmatprep.subr.mxu0 0.0
      %1450 = vmatpush1.msra.mxu0 0.0
      %1451 = vmatprep.subr.mxu0 0.0
      %1452 = vmatpush1.msra.mxu0 0.0
      %1453 = vmatprep.subr.mxu0 0.0
      %1454 = vmatpush1.msra.mxu0 0.0
      %1455 = vmatprep.subr.mxu0 0.0
      %1456 = vmatpush1.msra.mxu0 0.0
      %1457 = vmatprep.subr.mxu0 0.0
      %1458 = vmatpush1.msra.mxu0 0.0
      %1459 = vmatprep.subr.mxu0 0.0
      %1460 = vmatpush1.msra.mxu0 0.0
      %1461 = vmatprep.subr.mxu0 0.0
      %1462 = vmatpush1.msra.mxu0 0.0
      %1463 = vmatprep.subr.mxu0 0.0
      %1464 = vmatpush1.msra.mxu0 0.0
      %1465 = vmatprep.subr.mxu0 0.0
      %1466 = vmatpush1.msra.mxu0 0.0
      %1467 = vmatprep.subr.mxu0 0.0
      %1468 = vmatpush1.msra.mxu0 0.0
      %1469 = vmatprep.subr.mxu0 0.0
      %1470 = vmatpush1.msra.mxu0 0.0
      %1471 = vmatprep.subr.mxu0 0.0
      %1472 = vmatpush1.msra.mxu0 0.0
      %1473 = vmatprep.subr.mxu0 0.0
      %1474 = vmatpush1.msra.mxu0 0.0
      %1475 = vmatprep.subr.mxu0 0.0
      %1476 = vmatpush1.msra.mxu0 0.0
      %1477 = vmatprep.subr.mxu0 0.0
      %1478 = vmatpush1.msra.mxu0 0.0
      %1479 = vmatprep.subr.mxu0 0.0
      %1480 = vmatpush1.msra.mxu0 0.0
      %1481 = vmatprep.subr.mxu0 0.0
      %1482 = vmatpush1.msra.mxu0 0.0
      %1483 = vmatprep.subr.mxu0 0.0
      %1484 = vmatpush1.msra.mxu0 0.0
      %1485 = vmatprep.subr.mxu0 0.0
      %1486 = vmatpush1.msra.mxu0 0.0
      %1487 = vmatprep.subr.mxu0 0.0
      %1488 = vmatpush1.msra.mxu0 0.0
      %1489 = vmatprep.subr.mxu0 0.0
      %1490 = vmatpush1.msra.mxu0 0.0
      %1491 = vmatprep.subr.mxu0 0.0
      %1492 = vmatpush1.msra.mxu0 0.0
      %1493 = vmatprep.subr.mxu0 0.0
      %1494 = vmatpush1.msra.mxu0 0.0
      %1495 = vmatprep.subr.mxu0 0.0
      %1496 = vmatpush1.msra.mxu0 0.0
      %1497 = vmatprep.subr.mxu0 0.0
      %1498 = vmatpush1.msra.mxu0 0.0
      %1499 = vmatprep.mubr.f32.mxu0 0.0
      %1500 = vmatmul.mubr.f32.gmra.mrb[0].mxu0 %v1429
      %v1501 = vpop.f32.mrb[0].mxu0
      %v1502 = vadd.f32 0.0, %v1501
      %v1503 = vpop.f32.mrb[0].mxu0
      %v1504 = vadd.f32 0.0, %v1503
      %1505 = vdwg.mxu0
      %v1506 = vadd.f32 %v1390, %v1502
      %v1507 = vadd.f32 %v1392, %v1504
      %v1508 = vld [vmem:[#allocation3] sm:$0xff]
      %v1509 = vld [vmem:[#allocation3 + $0x8] sm:$0xf]
      %1510 = vrot.lane.b32.xlu0 %v1204, 127
      %v1511 = vpop.permute.xlu0 %1510
      %v1512 = vrot.slane %v1511, 4
      %v1513 = vsel %vm585, %v1512, %v1511
      %v1516 = vmul.f32 %v1508, %v1513
      %v1517 = vmul.f32 %v1509, %v1512
      %s1518 = scalar_lea.vmem %s4, 12
      %v1519 = vld [vmem:[%s1518] sm:$0xf]
      %v1522 = vcombine.high %v1516, %v1516
      %1523 = vrot.lane.b32.xlu0 %v1516, 1
      %v1524 = vpop.permute.xlu0 %1523
      %1525 = vrot.lane.b32.xlu0 %v1522, 1
      %v1526 = vpop.permute.xlu0 %1525
      %1527 = vrot.lane.b32.xlu0 %v1517, 1
      %v1528 = vpop.permute.xlu0 %1527
      %v1529 = vsel %vm602, %v1524, %v1526
      %v1530 = vsel %vm602, %v1526, %v1528
      %v1532 = vsel %vm293, %v1519, 0
      %v1534 = vsel %vm297, %v1529, 0
      %v1536 = vsel %vm297, %v1530, 0
      %1538 = vmatprep.subr.mxu0 %v1536
      %1539 = vmatpush1.msra.mxu0 %v1534
      %1540 = vmatprep.subr.mxu0 0.0
      %1541 = vmatpush1.msra.mxu0 0.0
      %1542 = vmatprep.subr.mxu0 0.0
      %1543 = vmatpush1.msra.mxu0 0.0
      %1544 = vmatprep.subr.mxu0 0.0
      %1545 = vmatpush1.msra.mxu0 0.0
      %1546 = vmatprep.subr.mxu0 0.0
      %1547 = vmatpush1.msra.mxu0 0.0
      %1548 = vmatprep.subr.mxu0 0.0
      %1549 = vmatpush1.msra.mxu0 0.0
      %1550 = vmatprep.subr.mxu0 0.0
      %1551 = vmatpush1.msra.mxu0 0.0
      %1552 = vmatprep.subr.mxu0 0.0
      %1553 = vmatpush1.msra.mxu0 0.0
      %1554 = vmatprep.subr.mxu0 0.0
      %1555 = vmatpush1.msra.mxu0 0.0
      %1556 = vmatprep.subr.mxu0 0.0
      %1557 = vmatpush1.msra.mxu0 0.0
      %1558 = vmatprep.subr.mxu0 0.0
      %1559 = vmatpush1.msra.mxu0 0.0
      %1560 = vmatprep.subr.mxu0 0.0
      %1561 = vmatpush1.msra.mxu0 0.0
      %1562 = vmatprep.subr.mxu0 0.0
      %1563 = vmatpush1.msra.mxu0 0.0
      %1564 = vmatprep.subr.mxu0 0.0
      %1565 = vmatpush1.msra.mxu0 0.0
      %1566 = vmatprep.subr.mxu0 0.0
      %1567 = vmatpush1.msra.mxu0 0.0
      %1568 = vmatprep.subr.mxu0 0.0
      %1569 = vmatpush1.msra.mxu0 0.0
      %1570 = vmatprep.subr.mxu0 0.0
      %1571 = vmatpush1.msra.mxu0 0.0
      %1572 = vmatprep.subr.mxu0 0.0
      %1573 = vmatpush1.msra.mxu0 0.0
      %1574 = vmatprep.subr.mxu0 0.0
      %1575 = vmatpush1.msra.mxu0 0.0
      %1576 = vmatprep.subr.mxu0 0.0
      %1577 = vmatpush1.msra.mxu0 0.0
      %1578 = vmatprep.subr.mxu0 0.0
      %1579 = vmatpush1.msra.mxu0 0.0
      %1580 = vmatprep.subr.mxu0 0.0
      %1581 = vmatpush1.msra.mxu0 0.0
      %1582 = vmatprep.subr.mxu0 0.0
      %1583 = vmatpush1.msra.mxu0 0.0
      %1584 = vmatprep.subr.mxu0 0.0
      %1585 = vmatpush1.msra.mxu0 0.0
      %1586 = vmatprep.subr.mxu0 0.0
      %1587 = vmatpush1.msra.mxu0 0.0
      %1588 = vmatprep.subr.mxu0 0.0
      %1589 = vmatpush1.msra.mxu0 0.0
      %1590 = vmatprep.subr.mxu0 0.0
      %1591 = vmatpush1.msra.mxu0 0.0
      %1592 = vmatprep.subr.mxu0 0.0
      %1593 = vmatpush1.msra.mxu0 0.0
      %1594 = vmatprep.subr.mxu0 0.0
      %1595 = vmatpush1.msra.mxu0 0.0
      %1596 = vmatprep.subr.mxu0 0.0
      %1597 = vmatpush1.msra.mxu0 0.0
      %1598 = vmatprep.subr.mxu0 0.0
      %1599 = vmatpush1.msra.mxu0 0.0
      %1600 = vmatprep.subr.mxu0 0.0
      %1601 = vmatpush1.msra.mxu0 0.0
      %1602 = vmatprep.mubr.f32.mxu0 0.0
      %1603 = vmatmul.mubr.f32.gmra.mrb[0].mxu0 %v1532
      %v1604 = vpop.f32.mrb[0].mxu0
      %v1605 = vadd.f32 0.0, %v1604
      %v1606 = vpop.f32.mrb[0].mxu0
      %v1607 = vadd.f32 0.0, %v1606
      %1608 = vdwg.mxu0
      %v1609 = vadd.f32 %v1506, %v1605
      %v1610 = vadd.f32 %v1507, %v1607
      %v1611 = vld [vmem:[#allocation3 + $0x4] sm:$0xff]
      %s1612 = scalar_lea.vmem %s4, 16
      %v1613 = vld [vmem:[%s1612] sm:$0xf]
      %v1615 = vcombine.high %v1611, %v1611
      %v1617 = vsel %vm293, %v1613, 0
      %v1619 = vsel %vm297, %v1611, 0
      %v1621 = vsel %vm297, %v1615, 0
      %1623 = vmatprep.subr.mxu0 %v1621
      %1624 = vmatpush1.msra.mxu0 %v1619
      %1625 = vmatprep.subr.mxu0 0.0
      %1626 = vmatpush1.msra.mxu0 0.0
      %1627 = vmatprep.subr.mxu0 0.0
      %1628 = vmatpush1.msra.mxu0 0.0
      %1629 = vmatprep.subr.mxu0 0.0
      %1630 = vmatpush1.msra.mxu0 0.0
      %1631 = vmatprep.subr.mxu0 0.0
      %1632 = vmatpush1.msra.mxu0 0.0
      %1633 = vmatprep.subr.mxu0 0.0
      %1634 = vmatpush1.msra.mxu0 0.0
      %1635 = vmatprep.subr.mxu0 0.0
      %1636 = vmatpush1.msra.mxu0 0.0
      %1637 = vmatprep.subr.mxu0 0.0
      %1638 = vmatpush1.msra.mxu0 0.0
      %1639 = vmatprep.subr.mxu0 0.0
      %1640 = vmatpush1.msra.mxu0 0.0
      %1641 = vmatprep.subr.mxu0 0.0
      %1642 = vmatpush1.msra.mxu0 0.0
      %1643 = vmatprep.subr.mxu0 0.0
      %1644 = vmatpush1.msra.mxu0 0.0
      %1645 = vmatprep.subr.mxu0 0.0
      %1646 = vmatpush1.msra.mxu0 0.0
      %1647 = vmatprep.subr.mxu0 0.0
      %1648 = vmatpush1.msra.mxu0 0.0
      %1649 = vmatprep.subr.mxu0 0.0
      %1650 = vmatpush1.msra.mxu0 0.0
      %1651 = vmatprep.subr.mxu0 0.0
      %1652 = vmatpush1.msra.mxu0 0.0
      %1653 = vmatprep.subr.mxu0 0.0
      %1654 = vmatpush1.msra.mxu0 0.0
      %1655 = vmatprep.subr.mxu0 0.0
      %1656 = vmatpush1.msra.mxu0 0.0
      %1657 = vmatprep.subr.mxu0 0.0
      %1658 = vmatpush1.msra.mxu0 0.0
      %1659 = vmatprep.subr.mxu0 0.0
      %1660 = vmatpush1.msra.mxu0 0.0
      %1661 = vmatprep.subr.mxu0 0.0
      %1662 = vmatpush1.msra.mxu0 0.0
      %1663 = vmatprep.subr.mxu0 0.0
      %1664 = vmatpush1.msra.mxu0 0.0
      %1665 = vmatprep.subr.mxu0 0.0
      %1666 = vmatpush1.msra.mxu0 0.0
      %1667 = vmatprep.subr.mxu0 0.0
      %1668 = vmatpush1.msra.mxu0 0.0
      %1669 = vmatprep.subr.mxu0 0.0
      %1670 = vmatpush1.msra.mxu0 0.0
      %1671 = vmatprep.subr.mxu0 0.0
      %1672 = vmatpush1.msra.mxu0 0.0
      %1673 = vmatprep.subr.mxu0 0.0
      %1674 = vmatpush1.msra.mxu0 0.0
      %1675 = vmatprep.subr.mxu0 0.0
      %1676 = vmatpush1.msra.mxu0 0.0
      %1677 = vmatprep.subr.mxu0 0.0
      %1678 = vmatpush1.msra.mxu0 0.0
      %1679 = vmatprep.subr.mxu0 0.0
      %1680 = vmatpush1.msra.mxu0 0.0
      %1681 = vmatprep.subr.mxu0 0.0
      %1682 = vmatpush1.msra.mxu0 0.0
      %1683 = vmatprep.subr.mxu0 0.0
      %1684 = vmatpush1.msra.mxu0 0.0
      %1685 = vmatprep.subr.mxu0 0.0
      %1686 = vmatpush1.msra.mxu0 0.0
      %1687 = vmatprep.mubr.f32.mxu0 0.0
      %1688 = vmatmul.mubr.f32.gmra.mrb[0].mxu0 %v1617
      %v1689 = vpop.f32.mrb[0].mxu0
      %v1690 = vadd.f32 0.0, %v1689
      %v1691 = vpop.f32.mrb[0].mxu0
      %v1692 = vadd.f32 0.0, %v1691
      %1693 = vdwg.mxu0
      %v1694 = vadd.f32 %v1609, %v1690
      %v1695 = vadd.f32 %v1610, %v1692
      %v1696 = vld [vmem:[#allocation3 + $0x4] sm:$0xff]
      %v1697 = vld [vmem:[#allocation3 + $0xc] sm:$0xf]
      %1698 = vrot.lane.b32.xlu0 %v1406, 1
      %v1699 = vpop.permute.xlu0 %1698
      %v1700 = vrot.slane %v1699, 4
      %v1701 = vsel %vm602, %v1700, %v1699
      %v1704 = vmul.f32 %v1696, %v1701
      %v1705 = vmul.f32 %v1697, %v1700
      %s1706 = scalar_lea.vmem %s4, 20
      %v1707 = vld [vmem:[%s1706] sm:$0xf]
      %v1710 = vcombine.high %v1704, %v1704
      %1711 = vrot.lane.b32.xlu0 %v1704, 127
      %v1712 = vpop.permute.xlu0 %1711
      %1713 = vrot.lane.b32.xlu0 %v1710, 127
      %v1714 = vpop.permute.xlu0 %1713
      %1715 = vrot.lane.b32.xlu0 %v1705, 127
      %v1716 = vpop.permute.xlu0 %1715
      %v1717 = vsel %vm585, %v1712, %v1714
      %v1718 = vsel %vm585, %v1714, %v1716
      %v1720 = vsel %vm293, %v1707, 0
      %v1722 = vsel %vm297, %v1717, 0
      %v1724 = vsel %vm297, %v1718, 0
      %1726 = vmatprep.subr.mxu0 %v1724
      %1727 = vmatpush1.msra.mxu0 %v1722
      %1728 = vmatprep.subr.mxu0 0.0
      %1729 = vmatpush1.msra.mxu0 0.0
      %1730 = vmatprep.subr.mxu0 0.0
      %1731 = vmatpush1.msra.mxu0 0.0
      %1732 = vmatprep.subr.mxu0 0.0
      %1733 = vmatpush1.msra.mxu0 0.0
      %1734 = vmatprep.subr.mxu0 0.0
      %1735 = vmatpush1.msra.mxu0 0.0
      %1736 = vmatprep.subr.mxu0 0.0
      %1737 = vmatpush1.msra.mxu0 0.0
      %1738 = vmatprep.subr.mxu0 0.0
      %1739 = vmatpush1.msra.mxu0 0.0
      %1740 = vmatprep.subr.mxu0 0.0
      %1741 = vmatpush1.msra.mxu0 0.0
      %1742 = vmatprep.subr.mxu0 0.0
      %1743 = vmatpush1.msra.mxu0 0.0
      %1744 = vmatprep.subr.mxu0 0.0
      %1745 = vmatpush1.msra.mxu0 0.0
      %1746 = vmatprep.subr.mxu0 0.0
      %1747 = vmatpush1.msra.mxu0 0.0
      %1748 = vmatprep.subr.mxu0 0.0
      %1749 = vmatpush1.msra.mxu0 0.0
      %1750 = vmatprep.subr.mxu0 0.0
      %1751 = vmatpush1.msra.mxu0 0.0
      %1752 = vmatprep.subr.mxu0 0.0
      %1753 = vmatpush1.msra.mxu0 0.0
      %1754 = vmatprep.subr.mxu0 0.0
      %1755 = vmatpush1.msra.mxu0 0.0
      %1756 = vmatprep.subr.mxu0 0.0
      %1757 = vmatpush1.msra.mxu0 0.0
      %1758 = vmatprep.subr.mxu0 0.0
      %1759 = vmatpush1.msra.mxu0 0.0
      %1760 = vmatprep.subr.mxu0 0.0
      %1761 = vmatpush1.msra.mxu0 0.0
      %1762 = vmatprep.subr.mxu0 0.0
      %1763 = vmatpush1.msra.mxu0 0.0
      %1764 = vmatprep.subr.mxu0 0.0
      %1765 = vmatpush1.msra.mxu0 0.0
      %1766 = vmatprep.subr.mxu0 0.0
      %1767 = vmatpush1.msra.mxu0 0.0
      %1768 = vmatprep.subr.mxu0 0.0
      %1769 = vmatpush1.msra.mxu0 0.0
      %1770 = vmatprep.subr.mxu0 0.0
      %1771 = vmatpush1.msra.mxu0 0.0
      %1772 = vmatprep.subr.mxu0 0.0
      %1773 = vmatpush1.msra.mxu0 0.0
      %1774 = vmatprep.subr.mxu0 0.0
      %1775 = vmatpush1.msra.mxu0 0.0
      %1776 = vmatprep.subr.mxu0 0.0
      %1777 = vmatpush1.msra.mxu0 0.0
      %1778 = vmatprep.subr.mxu0 0.0
      %1779 = vmatpush1.msra.mxu0 0.0
      %1780 = vmatprep.subr.mxu0 0.0
      %1781 = vmatpush1.msra.mxu0 0.0
      %1782 = vmatprep.subr.mxu0 0.0
      %1783 = vmatpush1.msra.mxu0 0.0
      %1784 = vmatprep.subr.mxu0 0.0
      %1785 = vmatpush1.msra.mxu0 0.0
      %1786 = vmatprep.subr.mxu0 0.0
      %1787 = vmatpush1.msra.mxu0 0.0
      %1788 = vmatprep.subr.mxu0 0.0
      %1789 = vmatpush1.msra.mxu0 0.0
      %1790 = vmatprep.mubr.f32.mxu0 0.0
      %1791 = vmatmul.mubr.f32.gmra.mrb[0].mxu0 %v1720
      %v1792 = vpop.f32.mrb[0].mxu0
      %v1793 = vadd.f32 0.0, %v1792
      %v1794 = vpop.f32.mrb[0].mxu0
      %v1795 = vadd.f32 0.0, %v1794
      %1796 = vdwg.mxu0
      %v1797 = vadd.f32 %v1694, %v1793
      %v1798 = vadd.f32 %v1695, %v1795
      %v1799 = vld [vmem:[#allocation3 + $0x4] sm:$0xff]
      %v1800 = vld [vmem:[#allocation3 + $0xc] sm:$0xf]
      %1801 = vrot.lane.b32.xlu0 %v1204, 15
      %v1802 = vpop.permute.xlu0 %1801
      %v1803 = vrot.slane %v1802, 4
      %v1804 = vsel %vm497, %v1803, %v1802
      %v1807 = vmul.f32 %v1799, %v1804
      %v1808 = vmul.f32 %v1800, %v1803
      %s1809 = scalar_lea.vmem %s4, 24
      %v1810 = vld [vmem:[%s1809] sm:$0xf]
      %v1813 = vcombine.high %v1807, %v1807
      %1814 = vrot.lane.b32.xlu0 %v1807, 113
      %v1815 = vpop.permute.xlu0 %1814
      %1816 = vrot.lane.b32.xlu0 %v1813, 113
      %v1817 = vpop.permute.xlu0 %1816
      %1818 = vrot.lane.b32.xlu0 %v1808, 113
      %v1819 = vpop.permute.xlu0 %1818
      %v1820 = vsel %vm480, %v1815, %v1817
      %v1821 = vsel %vm480, %v1817, %v1819
      %v1823 = vsel %vm293, %v1810, 0
      %v1825 = vsel %vm297, %v1820, 0
      %v1827 = vsel %vm297, %v1821, 0
      %1829 = vmatprep.subr.mxu0 %v1827
      %1830 = vmatpush1.msra.mxu0 %v1825
      %1831 = vmatprep.subr.mxu0 0.0
      %1832 = vmatpush1.msra.mxu0 0.0
      %1833 = vmatprep.subr.mxu0 0.0
      %1834 = vmatpush1.msra.mxu0 0.0
      %1835 = vmatprep.subr.mxu0 0.0
      %1836 = vmatpush1.msra.mxu0 0.0
      %1837 = vmatprep.subr.mxu0 0.0
      %1838 = vmatpush1.msra.mxu0 0.0
      %1839 = vmatprep.subr.mxu0 0.0
      %1840 = vmatpush1.msra.mxu0 0.0
      %1841 = vmatprep.subr.mxu0 0.0
      %1842 = vmatpush1.msra.mxu0 0.0
      %1843 = vmatprep.subr.mxu0 0.0
      %1844 = vmatpush1.msra.mxu0 0.0
      %1845 = vmatprep.subr.mxu0 0.0
      %1846 = vmatpush1.msra.mxu0 0.0
      %1847 = vmatprep.subr.mxu0 0.0
      %1848 = vmatpush1.msra.mxu0 0.0
      %1849 = vmatprep.subr.mxu0 0.0
      %1850 = vmatpush1.msra.mxu0 0.0
      %1851 = vmatprep.subr.mxu0 0.0
      %1852 = vmatpush1.msra.mxu0 0.0
      %1853 = vmatprep.subr.mxu0 0.0
      %1854 = vmatpush1.msra.mxu0 0.0
      %1855 = vmatprep.subr.mxu0 0.0
      %1856 = vmatpush1.msra.mxu0 0.0
      %1857 = vmatprep.subr.mxu0 0.0
      %1858 = vmatpush1.msra.mxu0 0.0
      %1859 = vmatprep.subr.mxu0 0.0
      %1860 = vmatpush1.msra.mxu0 0.0
      %1861 = vmatprep.subr.mxu0 0.0
      %1862 = vmatpush1.msra.mxu0 0.0
      %1863 = vmatprep.subr.mxu0 0.0
      %1864 = vmatpush1.msra.mxu0 0.0
      %1865 = vmatprep.subr.mxu0 0.0
      %1866 = vmatpush1.msra.mxu0 0.0
      %1867 = vmatprep.subr.mxu0 0.0
      %1868 = vmatpush1.msra.mxu0 0.0
      %1869 = vmatprep.subr.mxu0 0.0
      %1870 = vmatpush1.msra.mxu0 0.0
      %1871 = vmatprep.subr.mxu0 0.0
      %1872 = vmatpush1.msra.mxu0 0.0
      %1873 = vmatprep.subr.mxu0 0.0
      %1874 = vmatpush1.msra.mxu0 0.0
      %1875 = vmatprep.subr.mxu0 0.0
      %1876 = vmatpush1.msra.mxu0 0.0
      %1877 = vmatprep.subr.mxu0 0.0
      %1878 = vmatpush1.msra.mxu0 0.0
      %1879 = vmatprep.subr.mxu0 0.0
      %1880 = vmatpush1.msra.mxu0 0.0
      %1881 = vmatprep.subr.mxu0 0.0
      %1882 = vmatpush1.msra.mxu0 0.0
      %1883 = vmatprep.subr.mxu0 0.0
      %1884 = vmatpush1.msra.mxu0 0.0
      %1885 = vmatprep.subr.mxu0 0.0
      %1886 = vmatpush1.msra.mxu0 0.0
      %1887 = vmatprep.subr.mxu0 0.0
      %1888 = vmatpush1.msra.mxu0 0.0
      %1889 = vmatprep.subr.mxu0 0.0
      %1890 = vmatpush1.msra.mxu0 0.0
      %1891 = vmatprep.subr.mxu0 0.0
      %1892 = vmatpush1.msra.mxu0 0.0
      %1893 = vmatprep.mubr.f32.mxu0 0.0
      %1894 = vmatmul.mubr.f32.gmra.mrb[0].mxu0 %v1823
      %v1895 = vpop.f32.mrb[0].mxu0
      %v1896 = vadd.f32 0.0, %v1895
      %v1897 = vpop.f32.mrb[0].mxu0
      %v1898 = vadd.f32 0.0, %v1897
      %1899 = vdwg.mxu0
      %v1900 = vadd.f32 %v1797, %v1896
      %v1901 = vadd.f32 %v1798, %v1898
      %v1902 = vld [vmem:[#allocation3 + $0x4] sm:$0xff]
      %v1903 = vld [vmem:[#allocation3 + $0xc] sm:$0xf]
      %s1904 = scalar_lea.vmem %s4, 28
      %v1905 = vld [vmem:[%s1904] sm:$0xf]
      %v1908 = vcombine.high %v1902, %v1902
      %1909 = vrot.lane.b32.xlu0 %v1902, 112
      %v1910 = vpop.permute.xlu0 %1909
      %1911 = vrot.lane.b32.xlu0 %v1908, 112
      %v1912 = vpop.permute.xlu0 %1911
      %1913 = vrot.lane.b32.xlu0 %v1903, 112
      %v1914 = vpop.permute.xlu0 %1913
      %v1915 = vsel %vm989, %v1910, %v1912
      %v1916 = vsel %vm989, %v1912, %v1914
      %v1918 = vsel %vm293, %v1905, 0
      %v1920 = vsel %vm297, %v1915, 0
      %v1922 = vsel %vm297, %v1916, 0
      %1924 = vmatprep.subr.mxu0 %v1922
      %1925 = vmatpush1.msra.mxu0 %v1920
      %1926 = vmatprep.subr.mxu0 0.0
      %1927 = vmatpush1.msra.mxu0 0.0
      %1928 = vmatprep.subr.mxu0 0.0
      %1929 = vmatpush1.msra.mxu0 0.0
      %1930 = vmatprep.subr.mxu0 0.0
      %1931 = vmatpush1.msra.mxu0 0.0
      %1932 = vmatprep.subr.mxu0 0.0
      %1933 = vmatpush1.msra.mxu0 0.0
      %1934 = vmatprep.subr.mxu0 0.0
      %1935 = vmatpush1.msra.mxu0 0.0
      %1936 = vmatprep.subr.mxu0 0.0
      %1937 = vmatpush1.msra.mxu0 0.0
      %1938 = vmatprep.subr.mxu0 0.0
      %1939 = vmatpush1.msra.mxu0 0.0
      %1940 = vmatprep.subr.mxu0 0.0
      %1941 = vmatpush1.msra.mxu0 0.0
      %1942 = vmatprep.subr.mxu0 0.0
      %1943 = vmatpush1.msra.mxu0 0.0
      %1944 = vmatprep.subr.mxu0 0.0
      %1945 = vmatpush1.msra.mxu0 0.0
      %1946 = vmatprep.subr.mxu0 0.0
      %1947 = vmatpush1.msra.mxu0 0.0
      %1948 = vmatprep.subr.mxu0 0.0
      %1949 = vmatpush1.msra.mxu0 0.0
      %1950 = vmatprep.subr.mxu0 0.0
      %1951 = vmatpush1.msra.mxu0 0.0
      %1952 = vmatprep.subr.mxu0 0.0
      %1953 = vmatpush1.msra.mxu0 0.0
      %1954 = vmatprep.subr.mxu0 0.0
      %1955 = vmatpush1.msra.mxu0 0.0
      %1956 = vmatprep.subr.mxu0 0.0
      %1957 = vmatpush1.msra.mxu0 0.0
      %1958 = vmatprep.subr.mxu0 0.0
      %1959 = vmatpush1.msra.mxu0 0.0
      %1960 = vmatprep.subr.mxu0 0.0
      %1961 = vmatpush1.msra.mxu0 0.0
      %1962 = vmatprep.subr.mxu0 0.0
      %1963 = vmatpush1.msra.mxu0 0.0
      %1964 = vmatprep.subr.mxu0 0.0
      %1965 = vmatpush1.msra.mxu0 0.0
      %1966 = vmatprep.subr.mxu0 0.0
      %1967 = vmatpush1.msra.mxu0 0.0
      %1968 = vmatprep.subr.mxu0 0.0
      %1969 = vmatpush1.msra.mxu0 0.0
      %1970 = vmatprep.subr.mxu0 0.0
      %1971 = vmatpush1.msra.mxu0 0.0
      %1972 = vmatprep.subr.mxu0 0.0
      %1973 = vmatpush1.msra.mxu0 0.0
      %1974 = vmatprep.subr.mxu0 0.0
      %1975 = vmatpush1.msra.mxu0 0.0
      %1976 = vmatprep.subr.mxu0 0.0
      %1977 = vmatpush1.msra.mxu0 0.0
      %1978 = vmatprep.subr.mxu0 0.0
      %1979 = vmatpush1.msra.mxu0 0.0
      %1980 = vmatprep.subr.mxu0 0.0
      %1981 = vmatpush1.msra.mxu0 0.0
      %1982 = vmatprep.subr.mxu0 0.0
      %1983 = vmatpush1.msra.mxu0 0.0
      %1984 = vmatprep.subr.mxu0 0.0
      %1985 = vmatpush1.msra.mxu0 0.0
      %1986 = vmatprep.subr.mxu0 0.0
      %1987 = vmatpush1.msra.mxu0 0.0
      %1988 = vmatprep.mubr.f32.mxu0 0.0
      %1989 = vmatmul.mubr.f32.gmra.mrb[0].mxu0 %v1918
      %v1990 = vpop.f32.mrb[0].mxu0
      %v1991 = vadd.f32 0.0, %v1990
      %v1992 = vpop.f32.mrb[0].mxu0
      %v1993 = vadd.f32 0.0, %v1992
      %1994 = vdwg.mxu0
      %v1995 = vadd.f32 %v1900, %v1991
      %v1996 = vadd.f32 %v1901, %v1993
      %v1997 = vld [vmem:[#allocation3 + $0x4] sm:$0xff]
      %v1998 = vld [vmem:[#allocation3 + $0xc] sm:$0xf]
      %1999 = vrot.lane.b32.xlu0 %v1406, 17
      %v2000 = vpop.permute.xlu0 %1999
      %v2001 = vrot.slane %v2000, 4
      %v2002 = vsel %vm382, %v2001, %v2000
      %v2005 = vmul.f32 %v1997, %v2002
      %v2006 = vmul.f32 %v1998, %v2001
      %s2007 = scalar_lea.vmem %s4, 32
      %v2008 = vld [vmem:[%s2007] sm:$0xf]
      %v2011 = vcombine.high %v2005, %v2005
      %2012 = vrot.lane.b32.xlu0 %v2005, 111
      %v2013 = vpop.permute.xlu0 %2012
      %2014 = vrot.lane.b32.xlu0 %v2011, 111
      %v2015 = vpop.permute.xlu0 %2014
      %2016 = vrot.lane.b32.xlu0 %v2006, 111
      %v2017 = vpop.permute.xlu0 %2016
      %v2018 = vsel %vm272, %v2013, %v2015
      %v2019 = vsel %vm272, %v2015, %v2017
      %v2021 = vsel %vm293, %v2008, 0
      %v2023 = vsel %vm297, %v2018, 0
      %v2025 = vsel %vm297, %v2019, 0
      %2027 = vmatprep.subr.mxu0 %v2025
      %2028 = vmatpush1.msra.mxu0 %v2023
      %2029 = vmatprep.subr.mxu0 0.0
      %2030 = vmatpush1.msra.mxu0 0.0
      %2031 = vmatprep.subr.mxu0 0.0
      %2032 = vmatpush1.msra.mxu0 0.0
      %2033 = vmatprep.subr.mxu0 0.0
      %2034 = vmatpush1.msra.mxu0 0.0
      %2035 = vmatprep.subr.mxu0 0.0
      %2036 = vmatpush1.msra.mxu0 0.0
      %2037 = vmatprep.subr.mxu0 0.0
      %2038 = vmatpush1.msra.mxu0 0.0
      %2039 = vmatprep.subr.mxu0 0.0
      %2040 = vmatpush1.msra.mxu0 0.0
      %2041 = vmatprep.subr.mxu0 0.0
      %2042 = vmatpush1.msra.mxu0 0.0
      %2043 = vmatprep.subr.mxu0 0.0
      %2044 = vmatpush1.msra.mxu0 0.0
      %2045 = vmatprep.subr.mxu0 0.0
      %2046 = vmatpush1.msra.mxu0 0.0
      %2047 = vmatprep.subr.mxu0 0.0
      %2048 = vmatpush1.msra.mxu0 0.0
      %2049 = vmatprep.subr.mxu0 0.0
      %2050 = vmatpush1.msra.mxu0 0.0
      %2051 = vmatprep.subr.mxu0 0.0
      %2052 = vmatpush1.msra.mxu0 0.0
      %2053 = vmatprep.subr.mxu0 0.0
      %2054 = vmatpush1.msra.mxu0 0.0
      %2055 = vmatprep.subr.mxu0 0.0
      %2056 = vmatpush1.msra.mxu0 0.0
      %2057 = vmatprep.subr.mxu0 0.0
      %2058 = vmatpush1.msra.mxu0 0.0
      %2059 = vmatprep.subr.mxu0 0.0
      %2060 = vmatpush1.msra.mxu0 0.0
      %2061 = vmatprep.subr.mxu0 0.0
      %2062 = vmatpush1.msra.mxu0 0.0
      %2063 = vmatprep.subr.mxu0 0.0
      %2064 = vmatpush1.msra.mxu0 0.0
      %2065 = vmatprep.subr.mxu0 0.0
      %2066 = vmatpush1.msra.mxu0 0.0
      %2067 = vmatprep.subr.mxu0 0.0
      %2068 = vmatpush1.msra.mxu0 0.0
      %2069 = vmatprep.subr.mxu0 0.0
      %2070 = vmatpush1.msra.mxu0 0.0
      %2071 = vmatprep.subr.mxu0 0.0
      %2072 = vmatpush1.msra.mxu0 0.0
      %2073 = vmatprep.subr.mxu0 0.0
      %2074 = vmatpush1.msra.mxu0 0.0
      %2075 = vmatprep.subr.mxu0 0.0
      %2076 = vmatpush1.msra.mxu0 0.0
      %2077 = vmatprep.subr.mxu0 0.0
      %2078 = vmatpush1.msra.mxu0 0.0
      %2079 = vmatprep.subr.mxu0 0.0
      %2080 = vmatpush1.msra.mxu0 0.0
      %2081 = vmatprep.subr.mxu0 0.0
      %2082 = vmatpush1.msra.mxu0 0.0
      %2083 = vmatprep.subr.mxu0 0.0
      %2084 = vmatpush1.msra.mxu0 0.0
      %2085 = vmatprep.subr.mxu0 0.0
      %2086 = vmatpush1.msra.mxu0 0.0
      %2087 = vmatprep.subr.mxu0 0.0
      %2088 = vmatpush1.msra.mxu0 0.0
      %2089 = vmatprep.subr.mxu0 0.0
      %2090 = vmatpush1.msra.mxu0 0.0
      %2091 = vmatprep.mubr.f32.mxu0 0.0
      %2092 = vmatmul.mubr.f32.gmra.mrb[0].mxu0 %v2021
      %v2093 = vpop.f32.mrb[0].mxu0
      %v2094 = vadd.f32 0.0, %v2093
      %v2095 = vpop.f32.mrb[0].mxu0
      %v2096 = vadd.f32 0.0, %v2095
      %2097 = vdwg.mxu0
      %v2098 = vadd.f32 %v1995, %v2094
      %v2099 = vadd.f32 %v1996, %v2096
      %v2102 = vcombine.low %v2098, %v2099
      %v2104 = vadd.f32 %v252, %v2102
      %v2105 = vld [vmem:[%s5] sm:$0xf]
      %2107 = vset.pattern.permute.xlu0 0
      %2108 = vperm.xlu0 %2107, %v2105
      %v2109 = vpop.permute.xlu0 %2108
      %v2111 = vunpack.c.l.s4 839922192
      %v2112 = vunpack.c.0.s8 %v2111
      %v2113 = vlaneseq
      %v2114 = vshrl.u32 %v2113, 7
      %v2115 = vsub.s32 %v2112, %v2114
      %v2116 = vrot.slane %v2109, %v2115
      %v2118 = vadd.f32 %v2104, %v2116
      %vm2119 = vcmp.ge.f32.partialorder %v2118, 0.0
      %v2120 = vmul.f32 %v2118, 0.01
      %v2121 = vsel %vm2119, %v2118, %v2120
      %2122 = vst [vmem:[%s251] sm:$0xff] %v2121
      %p2123 = scmp.lt.s32.totalorder %s17, 1
      %s2124 = scalar_select %p2123, %s17, 1
      %s2125 = smul.addr %s2124, 2
      %s2126 = smul.addr %s2125, 4
      %s2127 = scalar_lea.vmem %s6, %s2126
      // Predicated region
      $region45: #{resnet_block_forward.1} parent=43 // pred_check
        %p2128 = pneg %p166
      $region46: #{resnet_block_forward.1} parent=43 // pred_check_branch
        %2130 = sbr.rel (%p2128) target = $region48
      $region47: #{resnet_block_forward.1} parent=43 // pred_region
        _
      $region48: #{resnet_block_forward.1} parent=43 // pred_fallthru
        _
    $region44: #{resnet_block_forward.1} parent=5 // pred_fallthru
      _
    %p2131 = scmp.le.s32.totalorder 2, %s12
    // Predicated region
    $region49: #{resnet_block_forward.1} parent=5 // pred_check
      %p2132 = pneg %p2131
    $region50: #{resnet_block_forward.1} parent=5 // pred_check_branch
      %2134 = sbr.rel (%p2132) target = $region52
    $region51: #{resnet_block_forward.1} parent=5 // pred_region
      %s2135 = ssub.s32 %s12, 2
      // Predicated region
      $region53: #{resnet_block_forward.1} parent=51 // pred_check
        %p2136 = pneg %p172
      $region54: #{resnet_block_forward.1} parent=51 // pred_check_branch
        %2138 = sbr.rel (%p2136) target = $region56
      $region55: #{resnet_block_forward.1} parent=51 // pred_region
        %p2139 = scmp.lt.s32.totalorder %s18, 1
        %s2140 = scalar_select %p2139, %s18, 1
        %s2141 = smul.addr %s2140, 2
        %s2142 = smul.addr %s2141, 4
        %s2143 = scalar_lea.vmem %s6, %s2142
      $region56: #{resnet_block_forward.1} parent=51 // pred_fallthru
        _
    $region52: #{resnet_block_forward.1} parent=5 // pred_fallthru
      _
  $region6: #{resnet_block_forward.1} parent=0 // loop_footer
    %s16 = sadd.s32 1, %s12
  $region7: #{resnet_block_forward.1} parent=0 // loop_footer_branch
    %11 = sbr.rel target = $region3
  $region8: #{resnet_block_forward.1} parent=0 // loop_exit
    _

</llo_original>
